<compile_context>
chip_gen: v7x
topology: tpu7x:2x2x1
jax: 0.10.0
libtpu: 0.0.40
codegen_flags: <defaults>
</compile_context>

<pallas_src>
import functools

import jax
import jax.numpy as jnp
from jax.experimental import pallas as pl
from jax.experimental.pallas import tpu as pltpu

# ----------------------------- configuration --------------------------------
FEATURE_DIM = 32     # config['feature_dim']
SEQ_LEN     = 8      # config['seq_length']
HIDDEN      = 256    # hard-coded 256 channels in the module's conv stack
BATCH       = 2
EPS         = 1e-5   # nn.LayerNorm default


# --------------------------------- kernel -----------------------------------
def _audio_preproc_kernel(x_ref, gamma_ref, beta_ref,
                          w1_ref, b1_ref, w2_ref, b2_ref, w3_ref, b3_ref,
                          out_ref, *, seq_len):
    x = x_ref[...].astype(jnp.float32)                  # [R, F], R = B*S
    rows = x.shape[0]

    # ---- LayerNorm over feature (lane) dim; biased variance == PyTorch ----
    mu = jnp.mean(x, axis=-1, keepdims=True)
    var = jnp.mean((x - mu) * (x - mu), axis=-1, keepdims=True)
    xn = (x - mu) * jax.lax.rsqrt(var + EPS)
    xn = xn * gamma_ref[...] + beta_ref[...]

    # Position of each row inside its sequence: used to zero conv taps at the
    # sequence boundaries and at batch seams (batch is folded into rows).
    pos = jax.lax.broadcasted_iota(jnp.int32, (rows, 1), 0) % seq_len
    first = pos == 0
    last = pos == seq_len - 1

    def conv3(h, w_ref, b_ref):
        # h: [R, Cin] f32; w_ref: [3*Cin, Cout] bf16 (tap-major rows);
        # b_ref: [1, Cout] f32.
        cin = h.shape[1]
        h_prev = jnp.where(first, 0.0, pltpu.roll(h, shift=1, axis=0))
        h_next = jnp.where(last, 0.0, pltpu.roll(h, shift=rows - 1, axis=0))
        if cin % 128 == 0:
            # Lane-aligned: fuse the 3 taps into a single K = 3*Cin MXU matmul.
            lhs = jnp.concatenate([h_prev, h, h_next],
                                  axis=-1).astype(jnp.bfloat16)
            y = jnp.dot(lhs, w_ref[...], preferred_element_type=jnp.float32)
        else:
            # Unaligned Cin (layer 1, Cin=32): three small per-tap dots against
            # static row-slices of the fused weight (no full-weight vreg blob).
            y = (jnp.dot(h_prev.astype(jnp.bfloat16), w_ref[0:cin, :],
                         preferred_element_type=jnp.float32)
                 + jnp.dot(h.astype(jnp.bfloat16), w_ref[cin:2 * cin, :],
                           preferred_element_type=jnp.float32)
                 + jnp.dot(h_next.astype(jnp.bfloat16), w_ref[2 * cin:3 * cin, :],
                           preferred_element_type=jnp.float32))
        return y + b_ref[...]

    h1 = jnp.maximum(conv3(xn, w1_ref, b1_ref), 0.0)    # [R, 256]
    h2 = jnp.maximum(conv3(h1, w2_ref, b2_ref), 0.0)    # [R, 256]
    h3 = conv3(h2, w3_ref, b3_ref)                      # [R, F]

    out_ref[...] = h3.astype(out_ref.dtype)


# -------------------------------- wrapper ------------------------------------
def audio_preprocessor(x, params):
    """x: [B, S, F] float32 -> processed features [B, S, F].

    Conv weights are given as w[k, Cin, Cout] (tap k=0 multiplies x[t-1]); for a
    PyTorch nn.Conv1d weight W_pt[Cout, Cin, k] this is transpose(W_pt, (2,1,0)).
    """
    B, S, F = x.shape
    gamma, beta, w1, b1, w2, b2, w3, b3 = params
    R = B * S
    x2 = x.reshape(R, F)

    # Fuse taps into the contraction dim and narrow the MXU operands to bf16.
    def fuse(w):
        k, cin, cout = w.shape
        return w.reshape(k * cin, cout).astype(jnp.bfloat16)

    w1f, w2f, w3f = fuse(w1), fuse(w2), fuse(w3)

    full = lambda a: pl.BlockSpec(a.shape, lambda i: (0,) * a.ndim)
    kernel = functools.partial(_audio_preproc_kernel, seq_len=S)

    out = pl.pallas_call(
        kernel,
        out_shape=jax.ShapeDtypeStruct((R, F), x.dtype),
        grid_spec=pltpu.PrefetchScalarGridSpec(
            num_scalar_prefetch=0,
            grid=(1,),                                   # single step: whole problem
            in_specs=[
                pl.BlockSpec((R, F), lambda i: (0, 0)),  # x, batch folded into rows
                full(gamma), full(beta),
                full(w1f), full(b1),
                full(w2f), full(b2),
                full(w3f), full(b3),
            ],
            out_specs=pl.BlockSpec((R, F), lambda i: (0, 0)),
        ),
        compiler_params=pltpu.CompilerParams(
            dimension_semantics=("arbitrary",)),
    )(x2, gamma, beta, w1f, b1, w2f, b2, w3f, b3)
    return out.reshape(B, S, F)


# ------------------------------ references -----------------------------------
def _reference_f32(x, params):
    """Pure-f32 PyTorch-semantics reference (LayerNorm + 3x Conv1d k=3 'same')."""
    gamma, beta, w1, b1, w2, b2, w3, b3 = params
    mu = jnp.mean(x, axis=-1, keepdims=True)
    var = jnp.mean((x - mu) ** 2, axis=-1, keepdims=True)
    h = (x - mu) / jnp.sqrt(var + EPS) * gamma[0] + beta[0]

    def conv(h, w, b):
        S = h.shape[1]
        hp = jnp.pad(h, ((0, 0), (1, 1), (0, 0)))
        return (jnp.einsum('bsc,cd->bsd', hp[:, 0:S], w[0])
                + jnp.einsum('bsc,cd->bsd', hp[:, 1:S + 1], w[1])
                + jnp.einsum('bsc,cd->bsd', hp[:, 2:S + 2], w[2]) + b[0])

    h = jax.nn.relu(conv(h, w1, b1))
    h = jax.nn.relu(conv(h, w2, b2))
    return conv(h, w3, b3)


def _reference_mixed(x, params):
    """Same math as the kernel: bf16 matmul operands, f32 accumulate/elementwise."""
    gamma, beta, w1, b1, w2, b2, w3, b3 = params
    mu = jnp.mean(x, axis=-1, keepdims=True)
    var = jnp.mean((x - mu) ** 2, axis=-1, keepdims=True)
    h = (x - mu) / jnp.sqrt(var + EPS) * gamma[0] + beta[0]

    def conv(h, w, b):
        S, C = h.shape[1], h.shape[2]
        hp = jnp.pad(h, ((0, 0), (1, 1), (0, 0)))
        taps = jnp.concatenate([hp[:, 0:S], hp[:, 1:S + 1], hp[:, 2:S + 2]],
                               axis=-1).astype(jnp.bfloat16)
        wf = w.reshape(3 * C, -1).astype(jnp.bfloat16)
        return jnp.einsum('bsk,kd->bsd', taps, wf,
                          preferred_element_type=jnp.float32) + b[0]

    h = jax.nn.relu(conv(h, w1, b1))
    h = jax.nn.relu(conv(h, w2, b2))
    return conv(h, w3, b3)


def _init_params(key):
    ks = jax.random.split(key, 8)
    scale = 0.05
    gamma = 1.0 + 0.1 * jax.random.normal(ks[6], (1, FEATURE_DIM), jnp.float32)
    beta = 0.1 * jax.random.normal(ks[7], (1, FEATURE_DIM), jnp.float32)
    w1 = scale * jax.random.normal(ks[0], (3, FEATURE_DIM, HIDDEN), jnp.float32)
    b1 = scale * jax.random.normal(ks[1], (1, HIDDEN), jnp.float32)
    w2 = scale * jax.random.normal(ks[2], (3, HIDDEN, HIDDEN), jnp.float32)
    b2 = scale * jax.random.normal(ks[3], (1, HIDDEN), jnp.float32)
    w3 = scale * jax.random.normal(ks[4], (3, HIDDEN, FEATURE_DIM), jnp.float32)
    b3 = scale * jax.random.normal(ks[5], (1, FEATURE_DIM), jnp.float32)
    return (gamma, beta, w1, b1, w2, b2, w3, b3)


if __name__ == "__main__":
    key = jax.random.PRNGKey(0)
    kx, kp = jax.random.split(key)
    x = jax.random.normal(kx, (BATCH, SEQ_LEN, FEATURE_DIM), jnp.float32)
    params = _init_params(kp)

    out = jax.block_until_ready(audio_preprocessor(x, params))
    assert out.shape == (BATCH, SEQ_LEN, FEATURE_DIM)

    # Tight check vs a reference using identical mixed precision (bf16 MXU
    # operands, f32 accumulation) -- validates kernel structure & seam masking.
    ref_mixed = _reference_mixed(x, params)
    err_m = float(jnp.max(jnp.abs(out - ref_mixed)))
    assert jnp.allclose(out, ref_mixed, atol=1e-3, rtol=1e-3), \
        f"mixed-precision reference mismatch, max abs err {err_m}"

    # Loose check vs the full-f32 module semantics (bf16 operand quantization
    # is the only difference).
    ref_f32 = _reference_f32(x, params)
    err_f = float(jnp.max(jnp.abs(out - ref_f32)))
    assert jnp.allclose(out, ref_f32, atol=2e-2, rtol=2e-2), \
        f"f32 reference mismatch, max abs err {err_f}"

    # TODO(synk): pad_or_truncate is pure data movement (pad/slice + mask);
    # left to plain JAX as it has no compute hot path worth a Pallas kernel.
    print("KERNEL_OK")
</pallas_src>

<mosaic_0001>
module attributes {stable_mosaic.version = 11 : i64} {
  func.func @_audio_preproc_kernel(%arg0: i32, %arg1: memref<16x32xf32, #tpu.memory_space<vmem>>, %arg2: memref<1x32xf32, #tpu.memory_space<vmem>>, %arg3: memref<1x32xf32, #tpu.memory_space<vmem>>, %arg4: memref<96x256xbf16, #tpu.memory_space<vmem>>, %arg5: memref<1x256xf32, #tpu.memory_space<vmem>>, %arg6: memref<768x256xbf16, #tpu.memory_space<vmem>>, %arg7: memref<1x256xf32, #tpu.memory_space<vmem>>, %arg8: memref<768x32xbf16, #tpu.memory_space<vmem>>, %arg9: memref<1x32xf32, #tpu.memory_space<vmem>>, %arg10: memref<16x32xf32, #tpu.memory_space<vmem>>) attributes {dimension_semantics = [#tpu.dimension_semantics<arbitrary>], iteration_bounds = array<i64: 1>, scalar_prefetch = 0 : i64, scratch_operands = 0 : i64, tpu.core_type = #tpu.core_type<tc>, window_params = [{pipeline_mode = #tpu.pipeline_mode<synchronous>, transform_indices = @transform_0, window_bounds = array<i64: 16, 32>}, {pipeline_mode = #tpu.pipeline_mode<synchronous>, transform_indices = @transform_1, window_bounds = array<i64: 1, 32>}, {pipeline_mode = #tpu.pipeline_mode<synchronous>, transform_indices = @transform_2, window_bounds = array<i64: 1, 32>}, {pipeline_mode = #tpu.pipeline_mode<synchronous>, transform_indices = @transform_3, window_bounds = array<i64: 96, 256>}, {pipeline_mode = #tpu.pipeline_mode<synchronous>, transform_indices = @transform_4, window_bounds = array<i64: 1, 256>}, {pipeline_mode = #tpu.pipeline_mode<synchronous>, transform_indices = @transform_5, window_bounds = array<i64: 768, 256>}, {pipeline_mode = #tpu.pipeline_mode<synchronous>, transform_indices = @transform_6, window_bounds = array<i64: 1, 256>}, {pipeline_mode = #tpu.pipeline_mode<synchronous>, transform_indices = @transform_7, window_bounds = array<i64: 768, 32>}, {pipeline_mode = #tpu.pipeline_mode<synchronous>, transform_indices = @transform_8, window_bounds = array<i64: 1, 32>}, {pipeline_mode = #tpu.pipeline_mode<synchronous>, transform_indices = @transform_9, window_bounds = array<i64: 16, 32>}]} {
    %c0 = arith.constant 0 : index
    %c0_0 = arith.constant 0 : index
    %0 = vector.load %arg1[%c0, %c0_0] : memref<16x32xf32, #tpu.memory_space<vmem>>, vector<16x32xf32>
    %cst = arith.constant dense<0.000000e+00> : vector<16xf32>
    %1 = vector.multi_reduction <add>, %0, %cst [1] : vector<16x32xf32> to vector<16xf32>
    %2 = vector.shape_cast %1 : vector<16xf32> to vector<16x1xf32>
    %cst_1 = arith.constant 3.200000e+01 : f32
    %3 = vector.broadcast %cst_1 : f32 to vector<16x1xf32>
    %4 = arith.divf %2, %3 : vector<16x1xf32>
    %5 = vector.broadcast %4 : vector<16x1xf32> to vector<16x32xf32>
    %6 = arith.subf %0, %5 : vector<16x32xf32>
    %7 = vector.broadcast %4 : vector<16x1xf32> to vector<16x32xf32>
    %8 = arith.subf %0, %7 : vector<16x32xf32>
    %9 = arith.mulf %6, %8 : vector<16x32xf32>
    %cst_2 = arith.constant dense<0.000000e+00> : vector<16xf32>
    %10 = vector.multi_reduction <add>, %9, %cst_2 [1] : vector<16x32xf32> to vector<16xf32>
    %11 = vector.shape_cast %10 : vector<16xf32> to vector<16x1xf32>
    %cst_3 = arith.constant 3.200000e+01 : f32
    %12 = vector.broadcast %cst_3 : f32 to vector<16x1xf32>
    %13 = arith.divf %11, %12 : vector<16x1xf32>
    %14 = vector.broadcast %4 : vector<16x1xf32> to vector<16x32xf32>
    %15 = arith.subf %0, %14 : vector<16x32xf32>
    %cst_4 = arith.constant 9.99999974E-6 : f32
    %16 = vector.broadcast %cst_4 : f32 to vector<16x1xf32>
    %17 = arith.addf %13, %16 : vector<16x1xf32>
    %18 = math.rsqrt %17 : vector<16x1xf32>
    %19 = vector.broadcast %18 : vector<16x1xf32> to vector<16x32xf32>
    %20 = arith.mulf %15, %19 : vector<16x32xf32>
    %c0_5 = arith.constant 0 : index
    %c0_6 = arith.constant 0 : index
    %21 = vector.load %arg2[%c0_5, %c0_6] : memref<1x32xf32, #tpu.memory_space<vmem>>, vector<1x32xf32>
    %22 = vector.broadcast %21 : vector<1x32xf32> to vector<16x32xf32>
    %23 = arith.mulf %20, %22 : vector<16x32xf32>
    %c0_7 = arith.constant 0 : index
    %c0_8 = arith.constant 0 : index
    %24 = vector.load %arg3[%c0_7, %c0_8] : memref<1x32xf32, #tpu.memory_space<vmem>>, vector<1x32xf32>
    %25 = vector.broadcast %24 : vector<1x32xf32> to vector<16x32xf32>
    %26 = arith.addf %23, %25 : vector<16x32xf32>
    %27 = tpu.iota {dimensions = array<i32: 0>} : vector<16x1xi32>
    %c8_i32 = arith.constant 8 : i32
    %c0_i32 = arith.constant 0 : i32
    %28 = arith.cmpi eq, %c8_i32, %c0_i32 : i32
    %c1_i32 = arith.constant 1 : i32
    %29 = arith.select %28, %c1_i32, %c8_i32 : i32
    %30 = vector.broadcast %29 : i32 to vector<16x1xi32>
    %31 = arith.remsi %27, %30 : vector<16x1xi32>
    %c0_i32_9 = arith.constant 0 : i32
    %32 = vector.broadcast %c0_i32_9 : i32 to vector<16x1xi32>
    %33 = arith.cmpi ne, %31, %32 : vector<16x1xi32>
    %c0_i32_10 = arith.constant 0 : i32
    %34 = vector.broadcast %c0_i32_10 : i32 to vector<16x1xi32>
    %35 = arith.cmpi slt, %31, %34 : vector<16x1xi32>
    %c0_i32_11 = arith.constant 0 : i32
    %36 = arith.cmpi slt, %29, %c0_i32_11 : i32
    %37 = vector.broadcast %36 : i1 to vector<16x1xi1>
    %38 = vector.broadcast %37 : vector<16x1xi1> to vector<16x1xi1>
    %39 = arith.xori %35, %38 : vector<16x1xi1>
    %40 = arith.andi %39, %33 : vector<16x1xi1>
    %41 = vector.broadcast %29 : i32 to vector<16x1xi32>
    %42 = arith.addi %31, %41 : vector<16x1xi32>
    %43 = arith.select %40, %42, %31 : vector<16x1xi1>, vector<16x1xi32>
    %c0_i32_12 = arith.constant 0 : i32
    %44 = vector.broadcast %c0_i32_12 : i32 to vector<16x1xi32>
    %45 = arith.cmpi eq, %43, %44 : vector<16x1xi32>
    %c7_i32 = arith.constant 7 : i32
    %46 = vector.broadcast %c7_i32 : i32 to vector<16x1xi32>
    %47 = arith.cmpi eq, %43, %46 : vector<16x1xi32>
    %c1_i32_13 = arith.constant 1 : i32
    %48 = tpu.dynamic_rotate %26 by %c1_i32_13 dim 0 : vector<16x32xf32>, i32 -> vector<16x32xf32>
    %cst_14 = arith.constant 0.000000e+00 : f32
    %49 = vector.shape_cast %45 : vector<16x1xi1> to vector<16x1xi1>
    %50 = vector.broadcast %49 : vector<16x1xi1> to vector<16x32xi1>
    %51 = vector.broadcast %cst_14 : f32 to vector<16x32xf32>
    %52 = arith.select %50, %51, %48 : vector<16x32xi1>, vector<16x32xf32>
    %c15_i32 = arith.constant 15 : i32
    %53 = tpu.dynamic_rotate %26 by %c15_i32 dim 0 : vector<16x32xf32>, i32 -> vector<16x32xf32>
    %cst_15 = arith.constant 0.000000e+00 : f32
    %54 = vector.shape_cast %47 : vector<16x1xi1> to vector<16x1xi1>
    %55 = vector.broadcast %54 : vector<16x1xi1> to vector<16x32xi1>
    %56 = vector.broadcast %cst_15 : f32 to vector<16x32xf32>
    %57 = arith.select %55, %56, %53 : vector<16x32xi1>, vector<16x32xf32>
    %58 = arith.truncf %52 : vector<16x32xf32> to vector<16x32xbf16>
    %c0_16 = arith.constant 0 : index
    %c0_17 = arith.constant 0 : index
    %59 = vector.load %arg4[%c0_16, %c0_17] : memref<96x256xbf16, #tpu.memory_space<vmem>>, vector<32x256xbf16>
    %cst_18 = arith.constant dense<0.000000e+00> : vector<16x256xf32>
    %60 = tpu.matmul %58, %59, %cst_18 {dimension_numbers = #tpu.dot_dimension_numbers<[1], [0], [0], [1], [0, 0, 1, 1], [], []>} : vector<16x32xbf16>, vector<32x256xbf16>, vector<16x256xf32> -> vector<16x256xf32>
    %61 = arith.truncf %26 : vector<16x32xf32> to vector<16x32xbf16>
    %c32 = arith.constant 32 : index
    %c0_19 = arith.constant 0 : index
    %62 = vector.load %arg4[%c32, %c0_19] : memref<96x256xbf16, #tpu.memory_space<vmem>>, vector<32x256xbf16>
    %cst_20 = arith.constant dense<0.000000e+00> : vector<16x256xf32>
    %63 = tpu.matmul %61, %62, %cst_20 {dimension_numbers = #tpu.dot_dimension_numbers<[1], [0], [0], [1], [0, 0, 1, 1], [], []>} : vector<16x32xbf16>, vector<32x256xbf16>, vector<16x256xf32> -> vector<16x256xf32>
    %64 = arith.addf %60, %63 : vector<16x256xf32>
    %65 = arith.truncf %57 : vector<16x32xf32> to vector<16x32xbf16>
    %c64 = arith.constant 64 : index
    %c0_21 = arith.constant 0 : index
    %66 = vector.load %arg4[%c64, %c0_21] : memref<96x256xbf16, #tpu.memory_space<vmem>>, vector<32x256xbf16>
    %cst_22 = arith.constant dense<0.000000e+00> : vector<16x256xf32>
    %67 = tpu.matmul %65, %66, %cst_22 {dimension_numbers = #tpu.dot_dimension_numbers<[1], [0], [0], [1], [0, 0, 1, 1], [], []>} : vector<16x32xbf16>, vector<32x256xbf16>, vector<16x256xf32> -> vector<16x256xf32>
    %68 = arith.addf %64, %67 : vector<16x256xf32>
    %c0_23 = arith.constant 0 : index
    %c0_24 = arith.constant 0 : index
    %69 = vector.load %arg5[%c0_23, %c0_24] : memref<1x256xf32, #tpu.memory_space<vmem>>, vector<1x256xf32>
    %70 = vector.broadcast %69 : vector<1x256xf32> to vector<16x256xf32>
    %71 = arith.addf %68, %70 : vector<16x256xf32>
    %cst_25 = arith.constant 0.000000e+00 : f32
    %72 = vector.broadcast %cst_25 : f32 to vector<16x256xf32>
    %73 = arith.maximumf %71, %72 : vector<16x256xf32>
    %c1_i32_26 = arith.constant 1 : i32
    %74 = tpu.dynamic_rotate %73 by %c1_i32_26 dim 0 : vector<16x256xf32>, i32 -> vector<16x256xf32>
    %cst_27 = arith.constant 0.000000e+00 : f32
    %75 = vector.shape_cast %45 : vector<16x1xi1> to vector<16x1xi1>
    %76 = vector.broadcast %75 : vector<16x1xi1> to vector<16x256xi1>
    %77 = vector.broadcast %cst_27 : f32 to vector<16x256xf32>
    %78 = arith.select %76, %77, %74 : vector<16x256xi1>, vector<16x256xf32>
    %c15_i32_28 = arith.constant 15 : i32
    %79 = tpu.dynamic_rotate %73 by %c15_i32_28 dim 0 : vector<16x256xf32>, i32 -> vector<16x256xf32>
    %cst_29 = arith.constant 0.000000e+00 : f32
    %80 = vector.shape_cast %47 : vector<16x1xi1> to vector<16x1xi1>
    %81 = vector.broadcast %80 : vector<16x1xi1> to vector<16x256xi1>
    %82 = vector.broadcast %cst_29 : f32 to vector<16x256xf32>
    %83 = arith.select %81, %82, %79 : vector<16x256xi1>, vector<16x256xf32>
    %84 = tpu.concatenate %78, %73, %83 in 1 : vector<16x256xf32>, vector<16x256xf32>, vector<16x256xf32> -> vector<16x768xf32>
    %85 = arith.truncf %84 : vector<16x768xf32> to vector<16x768xbf16>
    %c0_30 = arith.constant 0 : index
    %c0_31 = arith.constant 0 : index
    %86 = vector.load %arg6[%c0_30, %c0_31] : memref<768x256xbf16, #tpu.memory_space<vmem>>, vector<768x256xbf16>
    %cst_32 = arith.constant dense<0.000000e+00> : vector<16x256xf32>
    %87 = tpu.matmul %85, %86, %cst_32 {dimension_numbers = #tpu.dot_dimension_numbers<[1], [0], [0], [1], [0, 0, 1, 1], [], []>} : vector<16x768xbf16>, vector<768x256xbf16>, vector<16x256xf32> -> vector<16x256xf32>
    %c0_33 = arith.constant 0 : index
    %c0_34 = arith.constant 0 : index
    %88 = vector.load %arg7[%c0_33, %c0_34] : memref<1x256xf32, #tpu.memory_space<vmem>>, vector<1x256xf32>
    %89 = vector.broadcast %88 : vector<1x256xf32> to vector<16x256xf32>
    %90 = arith.addf %87, %89 : vector<16x256xf32>
    %cst_35 = arith.constant 0.000000e+00 : f32
    %91 = vector.broadcast %cst_35 : f32 to vector<16x256xf32>
    %92 = arith.maximumf %90, %91 : vector<16x256xf32>
    %c1_i32_36 = arith.constant 1 : i32
    %93 = tpu.dynamic_rotate %92 by %c1_i32_36 dim 0 : vector<16x256xf32>, i32 -> vector<16x256xf32>
    %cst_37 = arith.constant 0.000000e+00 : f32
    %94 = vector.shape_cast %45 : vector<16x1xi1> to vector<16x1xi1>
    %95 = vector.broadcast %94 : vector<16x1xi1> to vector<16x256xi1>
    %96 = vector.broadcast %cst_37 : f32 to vector<16x256xf32>
    %97 = arith.select %95, %96, %93 : vector<16x256xi1>, vector<16x256xf32>
    %c15_i32_38 = arith.constant 15 : i32
    %98 = tpu.dynamic_rotate %92 by %c15_i32_38 dim 0 : vector<16x256xf32>, i32 -> vector<16x256xf32>
    %cst_39 = arith.constant 0.000000e+00 : f32
    %99 = vector.shape_cast %47 : vector<16x1xi1> to vector<16x1xi1>
    %100 = vector.broadcast %99 : vector<16x1xi1> to vector<16x256xi1>
    %101 = vector.broadcast %cst_39 : f32 to vector<16x256xf32>
    %102 = arith.select %100, %101, %98 : vector<16x256xi1>, vector<16x256xf32>
    %103 = tpu.concatenate %97, %92, %102 in 1 : vector<16x256xf32>, vector<16x256xf32>, vector<16x256xf32> -> vector<16x768xf32>
    %104 = arith.truncf %103 : vector<16x768xf32> to vector<16x768xbf16>
    %c0_40 = arith.constant 0 : index
    %c0_41 = arith.constant 0 : index
    %105 = vector.load %arg8[%c0_40, %c0_41] : memref<768x32xbf16, #tpu.memory_space<vmem>>, vector<768x32xbf16>
    %cst_42 = arith.constant dense<0.000000e+00> : vector<16x32xf32>
    %106 = tpu.matmul %104, %105, %cst_42 {dimension_numbers = #tpu.dot_dimension_numbers<[1], [0], [0], [1], [0, 0, 1, 1], [], []>} : vector<16x768xbf16>, vector<768x32xbf16>, vector<16x32xf32> -> vector<16x32xf32>
    %c0_43 = arith.constant 0 : index
    %c0_44 = arith.constant 0 : index
    %107 = vector.load %arg9[%c0_43, %c0_44] : memref<1x32xf32, #tpu.memory_space<vmem>>, vector<1x32xf32>
    %108 = vector.broadcast %107 : vector<1x32xf32> to vector<16x32xf32>
    %109 = arith.addf %106, %108 : vector<16x32xf32>
    %c0_45 = arith.constant 0 : index
    %c0_46 = arith.constant 0 : index
    %110 = vector.load %arg10[%c0_45, %c0_46] : memref<16x32xf32, #tpu.memory_space<vmem>>, vector<16x32xf32>
    tpu.vector_store %arg10[%c0_45, %c0_46], %109 {strides = array<i32>} : memref<16x32xf32, #tpu.memory_space<vmem>>, vector<16x32xf32>,
    return
  }
  func.func @transform_0(%arg0: i32) -> (i32, i32) {
    %c0_i32 = arith.constant 0 : i32
    %c0_i32_0 = arith.constant 0 : i32
    %c0_i32_1 = arith.constant 0 : i32
    return %c0_i32, %c0_i32_0 : i32, i32
  }
  func.func @transform_1(%arg0: i32) -> (i32, i32) {
    %c0_i32 = arith.constant 0 : i32
    %c0_i32_0 = arith.constant 0 : i32
    %c0_i32_1 = arith.constant 0 : i32
    return %c0_i32, %c0_i32_0 : i32, i32
  }
  func.func @transform_2(%arg0: i32) -> (i32, i32) {
    %c0_i32 = arith.constant 0 : i32
    %c0_i32_0 = arith.constant 0 : i32
    %c0_i32_1 = arith.constant 0 : i32
    return %c0_i32, %c0_i32_0 : i32, i32
  }
  func.func @transform_3(%arg0: i32) -> (i32, i32) {
    %c0_i32 = arith.constant 0 : i32
    %c0_i32_0 = arith.constant 0 : i32
    %c0_i32_1 = arith.constant 0 : i32
    return %c0_i32, %c0_i32_0 : i32, i32
  }
  func.func @transform_4(%arg0: i32) -> (i32, i32) {
    %c0_i32 = arith.constant 0 : i32
    %c0_i32_0 = arith.constant 0 : i32
    %c0_i32_1 = arith.constant 0 : i32
    return %c0_i32, %c0_i32_0 : i32, i32
  }
  func.func @transform_5(%arg0: i32) -> (i32, i32) {
    %c0_i32 = arith.constant 0 : i32
    %c0_i32_0 = arith.constant 0 : i32
    %c0_i32_1 = arith.constant 0 : i32
    return %c0_i32, %c0_i32_0 : i32, i32
  }
  func.func @transform_6(%arg0: i32) -> (i32, i32) {
    %c0_i32 = arith.constant 0 : i32
    %c0_i32_0 = arith.constant 0 : i32
    %c0_i32_1 = arith.constant 0 : i32
    return %c0_i32, %c0_i32_0 : i32, i32
  }
  func.func @transform_7(%arg0: i32) -> (i32, i32) {
    %c0_i32 = arith.constant 0 : i32
    %c0_i32_0 = arith.constant 0 : i32
    %c0_i32_1 = arith.constant 0 : i32
    return %c0_i32, %c0_i32_0 : i32, i32
  }
  func.func @transform_8(%arg0: i32) -> (i32, i32) {
    %c0_i32 = arith.constant 0 : i32
    %c0_i32_0 = arith.constant 0 : i32
    %c0_i32_1 = arith.constant 0 : i32
    return %c0_i32, %c0_i32_0 : i32, i32
  }
  func.func @transform_9(%arg0: i32) -> (i32, i32) {
    %c0_i32 = arith.constant 0 : i32
    %c0_i32_0 = arith.constant 0 : i32
    %c0_i32_1 = arith.constant 0 : i32
    return %c0_i32, %c0_i32_0 : i32, i32
  }
}

</mosaic_0001>

<llo_original>
// kernel: tpu_custom_call.1
$region0: #{tpu_custom_call.1}
  #allocation0 [shape = 'u32[]', space=smem, size = 0x4, offset = 0x4, fixed_abs, tag = 'smem constant byte address 0x4 - core index']
  #allocation1 [shape = 'u32[144,128]{1,0:T(1,128)}', space=vmem, size = 0x12000, scoped, tag = 'internal scratch']
  %s0 = inlined_call_operand.vmem [shape: f32[16,32], index: 0, kind: input, shape index: {}]
  %s1 = inlined_call_operand.vmem [shape: f32[1,32], index: 1, kind: input, shape index: {}]
  %s2 = inlined_call_operand.vmem [shape: f32[1,32], index: 2, kind: input, shape index: {}]
  %s3 = inlined_call_operand.vmem [shape: bf16[96,256], index: 3, kind: input, shape index: {}]
  %s4 = inlined_call_operand.vmem [shape: f32[1,256], index: 4, kind: input, shape index: {}]
  %s5 = inlined_call_operand.hbm [shape: bf16[768,256], index: 5, kind: input, shape index: {}]
  %s6 = inlined_call_operand.vmem [shape: f32[1,256], index: 6, kind: input, shape index: {}]
  %s7 = inlined_call_operand.vmem [shape: bf16[768,32], index: 7, kind: input, shape index: {}]
  %s8 = inlined_call_operand.vmem [shape: f32[1,32], index: 8, kind: input, shape index: {}]
  %s9 = inlined_call_operand.hbm [shape: f32[16,32], index: 9, kind: output, shape index: {}]
  %s10 = sld [smem:[#allocation0]]
  $region50: #{tpu_custom_call.1} parent=0
    _
  %s12 = ssub.s32 1, %s10
  %s13 = scalar_select 0, %s12, %s10
  $region1: #{tpu_custom_call.1} parent=0
    #allocation2 [shape = 'u8[393216]{0}', space=vmem, size = 0x60000, scoped, tag = 'input window, operand 5, single buffered']
    #allocation3 [shape = 's32[1]{0}', space=sflag, size = 0x4, scoped, tag = 'scoped memory for tpu_custom_call.1']
    #allocation4 [shape = 's32[1]{0}', space=sflag, size = 0x4, scoped, tag = 'scoped memory for tpu_custom_call.1']
    #allocation5 [shape = 'u8[8192]{0}', space=vmem, size = 0x2000, scoped, tag = 'output window, operand 0, single buffered']
    %14 = vsyncpa [#allocation3], 0
    %15 = vsyncpa [#allocation4], 0
    // Predicated region
    $region2: #{tpu_custom_call.1} parent=1 // pred_check
      _
    $region3: #{tpu_custom_call.1} parent=1 // pred_check_branch
      %17 = sbr.rel (0) target = $region5
    $region4: #{tpu_custom_call.1} parent=1 // pred_region
      _
    $region5: #{tpu_custom_call.1} parent=1 // pred_fallthru
      _
    // Predicated region
    $region6: #{tpu_custom_call.1} parent=1 // pred_check
      _
    $region7: #{tpu_custom_call.1} parent=1 // pred_check_branch
      %19 = sbr.rel (0) target = $region9
    $region8: #{tpu_custom_call.1} parent=1 // pred_region
      _
    $region9: #{tpu_custom_call.1} parent=1 // pred_fallthru
      _
    // Predicated region
    $region10: #{tpu_custom_call.1} parent=1 // pred_check
      _
    $region11: #{tpu_custom_call.1} parent=1 // pred_check_branch
      %21 = sbr.rel (0) target = $region13
    $region12: #{tpu_custom_call.1} parent=1 // pred_region
      _
    $region13: #{tpu_custom_call.1} parent=1 // pred_fallthru
      _
    // Predicated region
    $region14: #{tpu_custom_call.1} parent=1 // pred_check
      _
    $region15: #{tpu_custom_call.1} parent=1 // pred_check_branch
      %23 = sbr.rel (0) target = $region17
    $region16: #{tpu_custom_call.1} parent=1 // pred_region
      _
    $region17: #{tpu_custom_call.1} parent=1 // pred_fallthru
      _
    // Predicated region
    $region18: #{tpu_custom_call.1} parent=1 // pred_check
      _
    $region19: #{tpu_custom_call.1} parent=1 // pred_check_branch
      %25 = sbr.rel (0) target = $region21
    $region20: #{tpu_custom_call.1} parent=1 // pred_region
      _
    $region21: #{tpu_custom_call.1} parent=1 // pred_fallthru
      _
    // Predicated region
    $region22: #{tpu_custom_call.1} parent=1 // pred_check
      _
    $region23: #{tpu_custom_call.1} parent=1 // pred_check_branch
      %27 = sbr.rel (0) target = $region25
    $region24: #{tpu_custom_call.1} parent=1 // pred_region
      %s29 = ssub.s32 12288, 12288
      %30 = vsyncadd [#allocation3], %s29
      %s31 = sshll.u32 [#allocation2], 4
      %s32 = int_to_ptr.vmem [resolvable:$true] %s31
      %37 = dma.hbm_to_vmem [thread:$0]  %s5, 12288, %s32, [#allocation3], 128, 128, 8
    $region25: #{tpu_custom_call.1} parent=1 // pred_fallthru
      _
    // Predicated region
    $region26: #{tpu_custom_call.1} parent=1 // pred_check
      _
    $region27: #{tpu_custom_call.1} parent=1 // pred_check_branch
      %39 = sbr.rel (0) target = $region29
    $region28: #{tpu_custom_call.1} parent=1 // pred_region
      _
    $region29: #{tpu_custom_call.1} parent=1 // pred_fallthru
      _
    // Predicated region
    $region30: #{tpu_custom_call.1} parent=1 // pred_check
      _
    $region31: #{tpu_custom_call.1} parent=1 // pred_check_branch
      %41 = sbr.rel (0) target = $region33
    $region32: #{tpu_custom_call.1} parent=1 // pred_region
      _
    $region33: #{tpu_custom_call.1} parent=1 // pred_fallthru
      _
    // Predicated region
    $region34: #{tpu_custom_call.1} parent=1 // pred_check
      _
    $region35: #{tpu_custom_call.1} parent=1 // pred_check_branch
      %43 = sbr.rel (0) target = $region37
    $region36: #{tpu_custom_call.1} parent=1 // pred_region
      _
    $region37: #{tpu_custom_call.1} parent=1 // pred_fallthru
      _
    // Predicated region
    $region38: #{tpu_custom_call.1} parent=1 // pred_check
      _
    $region39: #{tpu_custom_call.1} parent=1 // pred_check_branch
      %45 = sbr.rel (0) target = $region41
    $region40: #{tpu_custom_call.1} parent=1 // pred_region
      %46 = dma.done [#allocation3], 12288
    $region41: #{tpu_custom_call.1} parent=1 // pred_fallthru
      _
    %v48 = vld [vmem:[%s0] sm:$0xff]
    %v49 = vld [vmem:[%s0 + $0x8] sm:$0xff]
    %vm50 = vcmask 261120
    %v51 = vsel %vm50, %v48, 0.0
    %52 = vadd.xlane.f32.xlu0 %v51
    %v53 = vpop.xlane.xlu0 %52
    %v54 = vsel %vm50, %v49, 0.0
    %55 = vadd.xlane.f32.xlu0 %v54
    %v56 = vpop.xlane.xlu0 %55
    %v57 = vrcp.pop 32.0
    %v58 = vmul.f32 %v53, %v57
    %v59 = vmul.f32 %v56, %v57
    %v60 = vsub.f32 %v48, %v58
    %v61 = vsub.f32 %v49, %v59
    %v62 = vmul.f32 %v60, %v60
    %v63 = vmul.f32 %v61, %v61
    %v64 = vsel %vm50, %v62, 0.0
    %65 = vadd.xlane.f32.xlu0 %v64
    %v66 = vpop.xlane.xlu0 %65
    %v67 = vsel %vm50, %v63, 0.0
    %68 = vadd.xlane.f32.xlu0 %v67
    %v69 = vpop.xlane.xlu0 %68
    %v70 = vmul.f32 %v66, %v57
    %v71 = vmul.f32 %v69, %v57
    %v72 = vadd.f32 %v70, 1e-05
    %v73 = vadd.f32 %v71, 1e-05
    %v74 = vrsqrt.pop %v72
    %v75 = vrsqrt.pop %v73
    %v76 = vmul.f32 %v60, %v74
    %v77 = vmul.f32 %v61, %v75
    %v78 = vld [vmem:[%s1] sm:$0x1]
    %v80 = vlaneseq
    %v81 = vshrl.u32 %v80, 7
    %v82 = vsub.s32 0, %v81
    %v83 = vrot.slane %v78, %v82
    %v85 = vmul.f32 %v76, %v83
    %v86 = vmul.f32 %v77, %v83
    %v87 = vld [vmem:[%s2] sm:$0x1]
    %v89 = vlaneseq
    %v90 = vshrl.u32 %v89, 7
    %v91 = vsub.s32 0, %v90
    %v92 = vrot.slane %v87, %v91
    %v94 = vadd.f32 %v85, %v92
    %v95 = vadd.f32 %v86, %v92
    %v96 = vlaneseq
    %v97 = vshrl.u32 %v96, 7
    %v98 = vadd.s32 %v97, 8
    %vm99 = vcmp.lt.s32.totalorder %v97, 0
    %v100 = vsub.s32 0, %v97
    %v101 = vsel %vm99, %v100, %v97
    %v102 = vshrl.u32 %v101, 3
    %v103 = vand.u32 %v101, 7
    %v104 = vsub.s32 0, %v103
    %v105 = vsel %vm99, %v104, %v103
    %vm106 = vcmp.lt.s32.totalorder %v98, 0
    %v107 = vsub.s32 0, %v98
    %v108 = vsel %vm106, %v107, %v98
    %v109 = vshrl.u32 %v108, 3
    %v110 = vand.u32 %v108, 7
    %v111 = vsub.s32 0, %v110
    %v112 = vsel %vm106, %v111, %v110
    %vm113 = vcmp.ne.s32.totalorder %v105, 0
    %vm114 = vcmp.ne.s32.totalorder %v112, 0
    %vm115 = vcmp.lt.s32.totalorder %v105, 0
    %vm116 = vcmp.lt.s32.totalorder %v112, 0
    %vm117 = vmand %vm115, %vm113
    %vm118 = vmand %vm116, %vm114
    %v119 = vadd.s32 %v105, 8
    %v120 = vadd.s32 %v112, 8
    %v121 = vsel %vm117, %v119, %v105
    %v122 = vsel %vm118, %v120, %v112
    %vm123 = vcmp.eq.s32.totalorder %v121, 0
    %vm124 = vcmp.eq.s32.totalorder %v122, 0
    %vm125 = vcmp.eq.s32.totalorder %v121, 7
    %vm126 = vcmp.eq.s32.totalorder %v122, 7
    %v127 = vrot.slane %v94, 7
    %v128 = vrot.slane %v95, 7
    %vm129 = vcmp.lt.s32.totalorder %v97, 1
    %v130 = vsel %vm129, %v127, %v128
    %v131 = vsel %vm129, %v128, %v127
    %v132 = vsel %vm123, 1, 0
    %v133 = vsel %vm124, 1, 0
    %vm134 = vcmp.eq.s32.totalorder %v132, 1
    %vm135 = vcmp.eq.s32.totalorder %v133, 1
    %v136 = vsel %vm134, 0.0, %v131
    %v137 = vsel %vm135, 0.0, %v130
    %v138 = vrot.slane %v94, 1
    %v139 = vrot.slane %v95, 1
    %vm140 = vcmp.lt.s32.totalorder %v97, 7
    %v141 = vsel %vm140, %v138, %v139
    %v142 = vsel %vm140, %v139, %v138
    %v143 = vsel %vm125, 1, 0
    %v144 = vsel %vm126, 1, 0
    %vm145 = vcmp.eq.s32.totalorder %v143, 1
    %vm146 = vcmp.eq.s32.totalorder %v144, 1
    %v147 = vsel %vm145, 0.0, %v141
    %v148 = vsel %vm146, 0.0, %v142
    %v149 = vpack.c.bf16 %v137, %v136
    %v150 = vld [vmem:[%s3] sm:$0xff]
    %v151 = vld [vmem:[%s3 + $0x8] sm:$0xff]
    %v152 = vld [vmem:[%s3 + $0x10] sm:$0xff]
    %v153 = vld [vmem:[%s3 + $0x18] sm:$0xff]
    %v154 = vpack.c.bf16 %v95, %v94
    %v155 = vld [vmem:[%s3 + $0x20] sm:$0xff]
    %v156 = vld [vmem:[%s3 + $0x28] sm:$0xff]
    %v157 = vld [vmem:[%s3 + $0x30] sm:$0xff]
    %v158 = vld [vmem:[%s3 + $0x38] sm:$0xff]
    %v163 = vunpack.c.l.b16 %v155
    %v164 = vunpack.c.h.b16 %v155
    %v165 = vunpack.c.l.b16 %v156
    %v166 = vunpack.c.h.b16 %v156
    %v167 = vunpack.c.l.b16 %v157
    %v168 = vunpack.c.h.b16 %v157
    %v169 = vunpack.c.l.b16 %v158
    %v170 = vunpack.c.h.b16 %v158
    %v171 = vpack.c.b16 %v165, %v163
    %v172 = vpack.c.b16 %v166, %v164
    %v173 = vpack.c.b16 %v169, %v167
    %v174 = vpack.c.b16 %v170, %v168
    %v180 = vsel %vm50, %v154, 0
    %182 = vmatprep.subr.bf16.mxu0 %v172
    %183 = vmatpush1.bf16.msra.mxu0 %v171
    %184 = vmatprep.subr.bf16.mxu0 %v174
    %185 = vmatpush1.bf16.msra.mxu0 %v173
    %186 = vmatprep.subr.bf16.mxu0 0
    %187 = vmatpush1.bf16.msra.mxu0 0
    %188 = vmatprep.subr.bf16.mxu0 0
    %189 = vmatpush1.bf16.msra.mxu0 0
    %190 = vmatprep.subr.bf16.mxu0 0
    %191 = vmatpush1.bf16.msra.mxu0 0
    %192 = vmatprep.subr.bf16.mxu0 0
    %193 = vmatpush1.bf16.msra.mxu0 0
    %194 = vmatprep.subr.bf16.mxu0 0
    %195 = vmatpush1.bf16.msra.mxu0 0
    %196 = vmatprep.subr.bf16.mxu0 0
    %197 = vmatpush1.bf16.msra.mxu0 0
    %198 = vmatprep.subr.bf16.mxu0 0
    %199 = vmatpush1.bf16.msra.mxu0 0
    %200 = vmatprep.subr.bf16.mxu0 0
    %201 = vmatpush1.bf16.msra.mxu0 0
    %202 = vmatprep.subr.bf16.mxu0 0
    %203 = vmatpush1.bf16.msra.mxu0 0
    %204 = vmatprep.subr.bf16.mxu0 0
    %205 = vmatpush1.bf16.msra.mxu0 0
    %206 = vmatprep.subr.bf16.mxu0 0
    %207 = vmatpush1.bf16.msra.mxu0 0
    %208 = vmatprep.subr.bf16.mxu0 0
    %209 = vmatpush1.bf16.msra.mxu0 0
    %210 = vmatprep.subr.bf16.mxu0 0
    %211 = vmatpush1.bf16.msra.mxu0 0
    %212 = vmatprep.subr.bf16.mxu0 0
    %213 = vmatpush1.bf16.msra.mxu0 0
    %214 = vmatprep.mubr.bf16.mxu0 0
    %215 = vmatmul.mubr.bf16.gmra.mrb[0].mxu0 %v180
    %v216 = vpop.f32.mrb[0].mxu0
    %v217 = vadd.f32 0.0, %v216
    %v218 = vpop.f32.mrb[0].mxu0
    %v219 = vadd.f32 0.0, %v218
    %v220 = vpop.f32.mrb[0].mxu0
    %v221 = vadd.f32 0.0, %v220
    %v222 = vpop.f32.mrb[0].mxu0
    %v223 = vadd.f32 0.0, %v222
    %224 = vdwg.mxu0
    %v229 = vunpack.c.l.b16 %v150
    %v230 = vunpack.c.h.b16 %v150
    %v231 = vunpack.c.l.b16 %v151
    %v232 = vunpack.c.h.b16 %v151
    %v233 = vunpack.c.l.b16 %v152
    %v234 = vunpack.c.h.b16 %v152
    %v235 = vunpack.c.l.b16 %v153
    %v236 = vunpack.c.h.b16 %v153
    %v237 = vpack.c.b16 %v231, %v229
    %v238 = vpack.c.b16 %v232, %v230
    %v239 = vpack.c.b16 %v235, %v233
    %v240 = vpack.c.b16 %v236, %v234
    %v246 = vsel %vm50, %v149, 0
    %248 = vmatprep.subr.bf16.mxu0 %v238
    %249 = vmatpush1.bf16.msra.mxu0 %v237
    %250 = vmatprep.subr.bf16.mxu0 %v240
    %251 = vmatpush1.bf16.msra.mxu0 %v239
    %252 = vmatprep.subr.bf16.mxu0 0
    %253 = vmatpush1.bf16.msra.mxu0 0
    %254 = vmatprep.subr.bf16.mxu0 0
    %255 = vmatpush1.bf16.msra.mxu0 0
    %256 = vmatprep.subr.bf16.mxu0 0
    %257 = vmatpush1.bf16.msra.mxu0 0
    %258 = vmatprep.subr.bf16.mxu0 0
    %259 = vmatpush1.bf16.msra.mxu0 0
    %260 = vmatprep.subr.bf16.mxu0 0
    %261 = vmatpush1.bf16.msra.mxu0 0
    %262 = vmatprep.subr.bf16.mxu0 0
    %263 = vmatpush1.bf16.msra.mxu0 0
    %264 = vmatprep.subr.bf16.mxu0 0
    %265 = vmatpush1.bf16.msra.mxu0 0
    %266 = vmatprep.subr.bf16.mxu0 0
    %267 = vmatpush1.bf16.msra.mxu0 0
    %268 = vmatprep.subr.bf16.mxu0 0
    %269 = vmatpush1.bf16.msra.mxu0 0
    %270 = vmatprep.subr.bf16.mxu0 0
    %271 = vmatpush1.bf16.msra.mxu0 0
    %272 = vmatprep.subr.bf16.mxu0 0
    %273 = vmatpush1.bf16.msra.mxu0 0
    %274 = vmatprep.subr.bf16.mxu0 0
    %275 = vmatpush1.bf16.msra.mxu0 0
    %276 = vmatprep.subr.bf16.mxu0 0
    %277 = vmatpush1.bf16.msra.mxu0 0
    %278 = vmatprep.subr.bf16.mxu0 0
    %279 = vmatpush1.bf16.msra.mxu0 0
    %280 = vmatprep.mubr.bf16.mxu0 0
    %281 = vmatmul.mubr.bf16.gmra.mrb[0].mxu0 %v246
    %v282 = vpop.f32.mrb[0].mxu0
    %v283 = vadd.f32 %v217, %v282
    %v284 = vpop.f32.mrb[0].mxu0
    %v285 = vadd.f32 %v219, %v284
    %v286 = vpop.f32.mrb[0].mxu0
    %v287 = vadd.f32 %v221, %v286
    %v288 = vpop.f32.mrb[0].mxu0
    %v289 = vadd.f32 %v223, %v288
    %290 = vdwg.mxu0
    %v291 = vpack.c.bf16 %v148, %v147
    %v292 = vld [vmem:[%s3 + $0x40] sm:$0xff]
    %v293 = vld [vmem:[%s3 + $0x48] sm:$0xff]
    %v294 = vld [vmem:[%s3 + $0x50] sm:$0xff]
    %v295 = vld [vmem:[%s3 + $0x58] sm:$0xff]
    %v300 = vunpack.c.l.b16 %v292
    %v301 = vunpack.c.h.b16 %v292
    %v302 = vunpack.c.l.b16 %v293
    %v303 = vunpack.c.h.b16 %v293
    %v304 = vunpack.c.l.b16 %v294
    %v305 = vunpack.c.h.b16 %v294
    %v306 = vunpack.c.l.b16 %v295
    %v307 = vunpack.c.h.b16 %v295
    %v308 = vpack.c.b16 %v302, %v300
    %v309 = vpack.c.b16 %v303, %v301
    %v310 = vpack.c.b16 %v306, %v304
    %v311 = vpack.c.b16 %v307, %v305
    %v317 = vsel %vm50, %v291, 0
    %319 = vmatprep.subr.bf16.mxu0 %v309
    %320 = vmatpush1.bf16.msra.mxu0 %v308
    %321 = vmatprep.subr.bf16.mxu0 %v311
    %322 = vmatpush1.bf16.msra.mxu0 %v310
    %323 = vmatprep.subr.bf16.mxu0 0
    %324 = vmatpush1.bf16.msra.mxu0 0
    %325 = vmatprep.subr.bf16.mxu0 0
    %326 = vmatpush1.bf16.msra.mxu0 0
    %327 = vmatprep.subr.bf16.mxu0 0
    %328 = vmatpush1.bf16.msra.mxu0 0
    %329 = vmatprep.subr.bf16.mxu0 0
    %330 = vmatpush1.bf16.msra.mxu0 0
    %331 = vmatprep.subr.bf16.mxu0 0
    %332 = vmatpush1.bf16.msra.mxu0 0
    %333 = vmatprep.subr.bf16.mxu0 0
    %334 = vmatpush1.bf16.msra.mxu0 0
    %335 = vmatprep.subr.bf16.mxu0 0
    %336 = vmatpush1.bf16.msra.mxu0 0
    %337 = vmatprep.subr.bf16.mxu0 0
    %338 = vmatpush1.bf16.msra.mxu0 0
    %339 = vmatprep.subr.bf16.mxu0 0
    %340 = vmatpush1.bf16.msra.mxu0 0
    %341 = vmatprep.subr.bf16.mxu0 0
    %342 = vmatpush1.bf16.msra.mxu0 0
    %343 = vmatprep.subr.bf16.mxu0 0
    %344 = vmatpush1.bf16.msra.mxu0 0
    %345 = vmatprep.subr.bf16.mxu0 0
    %346 = vmatpush1.bf16.msra.mxu0 0
    %347 = vmatprep.subr.bf16.mxu0 0
    %348 = vmatpush1.bf16.msra.mxu0 0
    %349 = vmatprep.subr.bf16.mxu0 0
    %350 = vmatpush1.bf16.msra.mxu0 0
    %351 = vmatprep.mubr.bf16.mxu0 0
    %352 = vmatmul.mubr.bf16.gmra.mrb[0].mxu0 %v317
    %v353 = vpop.f32.mrb[0].mxu0
    %v354 = vadd.f32 0.0, %v353
    %v355 = vpop.f32.mrb[0].mxu0
    %v356 = vadd.f32 0.0, %v355
    %v357 = vpop.f32.mrb[0].mxu0
    %v358 = vadd.f32 0.0, %v357
    %v359 = vpop.f32.mrb[0].mxu0
    %v360 = vadd.f32 0.0, %v359
    %361 = vdwg.mxu0
    %v362 = vadd.f32 %v283, %v354
    %v363 = vadd.f32 %v285, %v356
    %v364 = vadd.f32 %v287, %v358
    %v365 = vadd.f32 %v289, %v360
    %v366 = vld [vmem:[%s4] sm:$0x3]
    %v368 = vlaneseq
    %v369 = vshrl.u32 %v368, 7
    %v370 = vsub.s32 0, %v369
    %v371 = vrot.slane %v366, %v370
    %v372 = vlaneseq
    %v373 = vshrl.u32 %v372, 7
    %v374 = vsub.s32 1, %v373
    %v375 = vrot.slane %v366, %v374
    %v378 = vadd.f32 %v362, %v371
    %v379 = vadd.f32 %v363, %v375
    %v380 = vadd.f32 %v364, %v371
    %v381 = vadd.f32 %v365, %v375
    %v382 = vmax.f32 %v378, 0.0
    %v383 = vmax.f32 %v379, 0.0
    %v384 = vmax.f32 %v380, 0.0
    %v385 = vmax.f32 %v381, 0.0
    %v386 = vrot.slane %v382, 7
    %v387 = vrot.slane %v383, 7
    %v388 = vrot.slane %v384, 7
    %v389 = vrot.slane %v385, 7
    %v390 = vsel %vm129, %v386, %v388
    %v391 = vsel %vm129, %v387, %v389
    %v392 = vsel %vm129, %v388, %v386
    %v393 = vsel %vm129, %v389, %v387
    %v394 = vsel %vm134, 0.0, %v392
    %v395 = vsel %vm134, 0.0, %v393
    %v396 = vsel %vm135, 0.0, %v390
    %v397 = vsel %vm135, 0.0, %v391
    %v398 = vrot.slane %v382, 1
    %v399 = vrot.slane %v383, 1
    %v400 = vrot.slane %v384, 1
    %v401 = vrot.slane %v385, 1
    %v402 = vsel %vm140, %v398, %v400
    %v403 = vsel %vm140, %v399, %v401
    %v404 = vsel %vm140, %v400, %v398
    %v405 = vsel %vm140, %v401, %v399
    %v406 = vsel %vm145, 0.0, %v402
    %v407 = vsel %vm145, 0.0, %v403
    %v408 = vsel %vm146, 0.0, %v404
    %v409 = vsel %vm146, 0.0, %v405
    %v410 = vpack.c.bf16 %v396, %v394
    %v411 = vpack.c.bf16 %v397, %v395
    %v412 = vpack.c.bf16 %v384, %v382
    %v413 = vpack.c.bf16 %v385, %v383
    %v414 = vpack.c.bf16 %v408, %v406
    %v415 = vpack.c.bf16 %v409, %v407
    %v416 = vld [vmem:[#allocation2] sm:$0xff]
    %v417 = vld [vmem:[#allocation2 + $0x8] sm:$0xff]
    %v418 = vld [vmem:[#allocation2 + $0x10] sm:$0xff]
    %v419 = vld [vmem:[#allocation2 + $0x18] sm:$0xff]
    %v420 = vld [vmem:[#allocation2 + $0x20] sm:$0xff]
    %v421 = vld [vmem:[#allocation2 + $0x28] sm:$0xff]
    %v422 = vld [vmem:[#allocation2 + $0x30] sm:$0xff]
    %v423 = vld [vmem:[#allocation2 + $0x38] sm:$0xff]
    %v424 = vld [vmem:[#allocation2 + $0x40] sm:$0xff]
    %v425 = vld [vmem:[#allocation2 + $0x48] sm:$0xff]
    %v426 = vld [vmem:[#allocation2 + $0x50] sm:$0xff]
    %v427 = vld [vmem:[#allocation2 + $0x58] sm:$0xff]
    %v428 = vld [vmem:[#allocation2 + $0x60] sm:$0xff]
    %v429 = vld [vmem:[#allocation2 + $0x68] sm:$0xff]
    %v430 = vld [vmem:[#allocation2 + $0x70] sm:$0xff]
    %v431 = vld [vmem:[#allocation2 + $0x78] sm:$0xff]
    %v432 = vld [vmem:[#allocation2 + $0x80] sm:$0xff]
    %v433 = vld [vmem:[#allocation2 + $0x88] sm:$0xff]
    %v434 = vld [vmem:[#allocation2 + $0x90] sm:$0xff]
    %v435 = vld [vmem:[#allocation2 + $0x98] sm:$0xff]
    %v436 = vld [vmem:[#allocation2 + $0xa0] sm:$0xff]
    %v437 = vld [vmem:[#allocation2 + $0xa8] sm:$0xff]
    %v438 = vld [vmem:[#allocation2 + $0xb0] sm:$0xff]
    %v439 = vld [vmem:[#allocation2 + $0xb8] sm:$0xff]
    %v440 = vld [vmem:[#allocation2 + $0xc0] sm:$0xff]
    %v441 = vld [vmem:[#allocation2 + $0xc8] sm:$0xff]
    %v442 = vld [vmem:[#allocation2 + $0xd0] sm:$0xff]
    %v443 = vld [vmem:[#allocation2 + $0xd8] sm:$0xff]
    %v444 = vld [vmem:[#allocation2 + $0xe0] sm:$0xff]
    %v445 = vld [vmem:[#allocation2 + $0xe8] sm:$0xff]
    %v446 = vld [vmem:[#allocation2 + $0xf0] sm:$0xff]
    %v447 = vld [vmem:[#allocation2 + $0xf8] sm:$0xff]
    %v448 = vld [vmem:[#allocation2 + $0x100] sm:$0xff]
    %v449 = vld [vmem:[#allocation2 + $0x108] sm:$0xff]
    %v450 = vld [vmem:[#allocation2 + $0x110] sm:$0xff]
    %v451 = vld [vmem:[#allocation2 + $0x118] sm:$0xff]
    %v452 = vld [vmem:[#allocation2 + $0x120] sm:$0xff]
    %v453 = vld [vmem:[#allocation2 + $0x128] sm:$0xff]
    %v454 = vld [vmem:[#allocation2 + $0x130] sm:$0xff]
    %v455 = vld [vmem:[#allocation2 + $0x138] sm:$0xff]
    %v456 = vld [vmem:[#allocation2 + $0x140] sm:$0xff]
    %v457 = vld [vmem:[#allocation2 + $0x148] sm:$0xff]
    %v458 = vld [vmem:[#allocation2 + $0x150] sm:$0xff]
    %v459 = vld [vmem:[#allocation2 + $0x158] sm:$0xff]
    %v460 = vld [vmem:[#allocation2 + $0x160] sm:$0xff]
    %v461 = vld [vmem:[#allocation2 + $0x168] sm:$0xff]
    %v462 = vld [vmem:[#allocation2 + $0x170] sm:$0xff]
    %v463 = vld [vmem:[#allocation2 + $0x178] sm:$0xff]
    %v464 = vld [vmem:[#allocation2 + $0x180] sm:$0xff]
    %v465 = vld [vmem:[#allocation2 + $0x188] sm:$0xff]
    %v466 = vld [vmem:[#allocation2 + $0x190] sm:$0xff]
    %v467 = vld [vmem:[#allocation2 + $0x198] sm:$0xff]
    %v468 = vld [vmem:[#allocation2 + $0x1a0] sm:$0xff]
    %v469 = vld [vmem:[#allocation2 + $0x1a8] sm:$0xff]
    %v470 = vld [vmem:[#allocation2 + $0x1b0] sm:$0xff]
    %v471 = vld [vmem:[#allocation2 + $0x1b8] sm:$0xff]
    %v472 = vld [vmem:[#allocation2 + $0x1c0] sm:$0xff]
    %v473 = vld [vmem:[#allocation2 + $0x1c8] sm:$0xff]
    %v474 = vld [vmem:[#allocation2 + $0x1d0] sm:$0xff]
    %v475 = vld [vmem:[#allocation2 + $0x1d8] sm:$0xff]
    %v476 = vld [vmem:[#allocation2 + $0x1e0] sm:$0xff]
    %v477 = vld [vmem:[#allocation2 + $0x1e8] sm:$0xff]
    %v478 = vld [vmem:[#allocation2 + $0x1f0] sm:$0xff]
    %v479 = vld [vmem:[#allocation2 + $0x1f8] sm:$0xff]
    %v480 = vld [vmem:[#allocation2 + $0x200] sm:$0xff]
    %v481 = vld [vmem:[#allocation2 + $0x208] sm:$0xff]
    %v482 = vld [vmem:[#allocation2 + $0x210] sm:$0xff]
    %v483 = vld [vmem:[#allocation2 + $0x218] sm:$0xff]
    %v484 = vld [vmem:[#allocation2 + $0x220] sm:$0xff]
    %v485 = vld [vmem:[#allocation2 + $0x228] sm:$0xff]
    %v486 = vld [vmem:[#allocation2 + $0x230] sm:$0xff]
    %v487 = vld [vmem:[#allocation2 + $0x238] sm:$0xff]
    %v488 = vld [vmem:[#allocation2 + $0x240] sm:$0xff]
    %v489 = vld [vmem:[#allocation2 + $0x248] sm:$0xff]
    %v490 = vld [vmem:[#allocation2 + $0x250] sm:$0xff]
    %v491 = vld [vmem:[#allocation2 + $0x258] sm:$0xff]
    %v492 = vld [vmem:[#allocation2 + $0x260] sm:$0xff]
    %v493 = vld [vmem:[#allocation2 + $0x268] sm:$0xff]
    %v494 = vld [vmem:[#allocation2 + $0x270] sm:$0xff]
    %v495 = vld [vmem:[#allocation2 + $0x278] sm:$0xff]
    %v496 = vld [vmem:[#allocation2 + $0x280] sm:$0xff]
    %v497 = vld [vmem:[#allocation2 + $0x288] sm:$0xff]
    %v498 = vld [vmem:[#allocation2 + $0x290] sm:$0xff]
    %v499 = vld [vmem:[#allocation2 + $0x298] sm:$0xff]
    %v500 = vld [vmem:[#allocation2 + $0x2a0] sm:$0xff]
    %v501 = vld [vmem:[#allocation2 + $0x2a8] sm:$0xff]
    %v502 = vld [vmem:[#allocation2 + $0x2b0] sm:$0xff]
    %v503 = vld [vmem:[#allocation2 + $0x2b8] sm:$0xff]
    %v504 = vld [vmem:[#allocation2 + $0x2c0] sm:$0xff]
    %v505 = vld [vmem:[#allocation2 + $0x2c8] sm:$0xff]
    %v506 = vld [vmem:[#allocation2 + $0x2d0] sm:$0xff]
    %v507 = vld [vmem:[#allocation2 + $0x2d8] sm:$0xff]
    %v508 = vld [vmem:[#allocation2 + $0x2e0] sm:$0xff]
    %v509 = vld [vmem:[#allocation2 + $0x2e8] sm:$0xff]
    %v510 = vld [vmem:[#allocation2 + $0x2f0] sm:$0xff]
    %v511 = vld [vmem:[#allocation2 + $0x2f8] sm:$0xff]
    %v512 = vld [vmem:[%s6] sm:$0x3]
    %v514 = vlaneseq
    %v515 = vshrl.u32 %v514, 7
    %v516 = vsub.s32 0, %v515
    %v517 = vrot.slane %v512, %v516
    %v518 = vlaneseq
    %v519 = vshrl.u32 %v518, 7
    %v520 = vsub.s32 1, %v519
    %v521 = vrot.slane %v512, %v520
    %v620 = vunpack.c.l.b16 %v416
    %v621 = vunpack.c.h.b16 %v416
    %v622 = vunpack.c.l.b16 %v417
    %v623 = vunpack.c.h.b16 %v417
    %v624 = vunpack.c.l.b16 %v418
    %v625 = vunpack.c.h.b16 %v418
    %v626 = vunpack.c.l.b16 %v419
    %v627 = vunpack.c.h.b16 %v419
    %v628 = vunpack.c.l.b16 %v420
    %v629 = vunpack.c.h.b16 %v420
    %v630 = vunpack.c.l.b16 %v421
    %v631 = vunpack.c.h.b16 %v421
    %v632 = vunpack.c.l.b16 %v422
    %v633 = vunpack.c.h.b16 %v422
    %v634 = vunpack.c.l.b16 %v423
    %v635 = vunpack.c.h.b16 %v423
    %v636 = vunpack.c.l.b16 %v424
    %v637 = vunpack.c.h.b16 %v424
    %v638 = vunpack.c.l.b16 %v425
    %v639 = vunpack.c.h.b16 %v425
    %v640 = vunpack.c.l.b16 %v426
    %v641 = vunpack.c.h.b16 %v426
    %v642 = vunpack.c.l.b16 %v427
    %v643 = vunpack.c.h.b16 %v427
    %v644 = vunpack.c.l.b16 %v428
    %v645 = vunpack.c.h.b16 %v428
    %v646 = vunpack.c.l.b16 %v429
    %v647 = vunpack.c.h.b16 %v429
    %v648 = vunpack.c.l.b16 %v430
    %v649 = vunpack.c.h.b16 %v430
    %v650 = vunpack.c.l.b16 %v431
    %v651 = vunpack.c.h.b16 %v431
    %v652 = vunpack.c.l.b16 %v432
    %v653 = vunpack.c.h.b16 %v432
    %v654 = vunpack.c.l.b16 %v433
    %v655 = vunpack.c.h.b16 %v433
    %v656 = vunpack.c.l.b16 %v434
    %v657 = vunpack.c.h.b16 %v434
    %v658 = vunpack.c.l.b16 %v435
    %v659 = vunpack.c.h.b16 %v435
    %v660 = vunpack.c.l.b16 %v436
    %v661 = vunpack.c.h.b16 %v436
    %v662 = vunpack.c.l.b16 %v437
    %v663 = vunpack.c.h.b16 %v437
    %v664 = vunpack.c.l.b16 %v438
    %v665 = vunpack.c.h.b16 %v438
    %v666 = vunpack.c.l.b16 %v439
    %v667 = vunpack.c.h.b16 %v439
    %v668 = vunpack.c.l.b16 %v440
    %v669 = vunpack.c.h.b16 %v440
    %v670 = vunpack.c.l.b16 %v441
    %v671 = vunpack.c.h.b16 %v441
    %v672 = vunpack.c.l.b16 %v442
    %v673 = vunpack.c.h.b16 %v442
    %v674 = vunpack.c.l.b16 %v443
    %v675 = vunpack.c.h.b16 %v443
    %v676 = vunpack.c.l.b16 %v444
    %v677 = vunpack.c.h.b16 %v444
    %v678 = vunpack.c.l.b16 %v445
    %v679 = vunpack.c.h.b16 %v445
    %v680 = vunpack.c.l.b16 %v446
    %v681 = vunpack.c.h.b16 %v446
    %v682 = vunpack.c.l.b16 %v447
    %v683 = vunpack.c.h.b16 %v447
    %v684 = vunpack.c.l.b16 %v448
    %v685 = vunpack.c.h.b16 %v448
    %v686 = vunpack.c.l.b16 %v449
    %v687 = vunpack.c.h.b16 %v449
    %v688 = vunpack.c.l.b16 %v450
    %v689 = vunpack.c.h.b16 %v450
    %v690 = vunpack.c.l.b16 %v451
    %v691 = vunpack.c.h.b16 %v451
    %v692 = vunpack.c.l.b16 %v452
    %v693 = vunpack.c.h.b16 %v452
    %v694 = vunpack.c.l.b16 %v453
    %v695 = vunpack.c.h.b16 %v453
    %v696 = vunpack.c.l.b16 %v454
    %v697 = vunpack.c.h.b16 %v454
    %v698 = vunpack.c.l.b16 %v455
    %v699 = vunpack.c.h.b16 %v455
    %v700 = vunpack.c.l.b16 %v456
    %v701 = vunpack.c.h.b16 %v456
    %v702 = vunpack.c.l.b16 %v457
    %v703 = vunpack.c.h.b16 %v457
    %v704 = vunpack.c.l.b16 %v458
    %v705 = vunpack.c.h.b16 %v458
    %v706 = vunpack.c.l.b16 %v459
    %v707 = vunpack.c.h.b16 %v459
    %v708 = vunpack.c.l.b16 %v460
    %v709 = vunpack.c.h.b16 %v460
    %v710 = vunpack.c.l.b16 %v461
    %v711 = vunpack.c.h.b16 %v461
    %v712 = vunpack.c.l.b16 %v462
    %v713 = vunpack.c.h.b16 %v462
    %v714 = vunpack.c.l.b16 %v463
    %v715 = vunpack.c.h.b16 %v463
    %v716 = vunpack.c.l.b16 %v464
    %v717 = vunpack.c.h.b16 %v464
    %v718 = vunpack.c.l.b16 %v465
    %v719 = vunpack.c.h.b16 %v465
    %v720 = vunpack.c.l.b16 %v466
    %v721 = vunpack.c.h.b16 %v466
    %v722 = vunpack.c.l.b16 %v467
    %v723 = vunpack.c.h.b16 %v467
    %v724 = vunpack.c.l.b16 %v468
    %v725 = vunpack.c.h.b16 %v468
    %v726 = vunpack.c.l.b16 %v469
    %v727 = vunpack.c.h.b16 %v469
    %v728 = vunpack.c.l.b16 %v470
    %v729 = vunpack.c.h.b16 %v470
    %v730 = vunpack.c.l.b16 %v471
    %v731 = vunpack.c.h.b16 %v471
    %v732 = vunpack.c.l.b16 %v472
    %v733 = vunpack.c.h.b16 %v472
    %v734 = vunpack.c.l.b16 %v473
    %v735 = vunpack.c.h.b16 %v473
    %v736 = vunpack.c.l.b16 %v474
    %v737 = vunpack.c.h.b16 %v474
    %v738 = vunpack.c.l.b16 %v475
    %v739 = vunpack.c.h.b16 %v475
    %v740 = vunpack.c.l.b16 %v476
    %v741 = vunpack.c.h.b16 %v476
    %v742 = vunpack.c.l.b16 %v477
    %v743 = vunpack.c.h.b16 %v477
    %v744 = vunpack.c.l.b16 %v478
    %v745 = vunpack.c.h.b16 %v478
    %v746 = vunpack.c.l.b16 %v479
    %v747 = vunpack.c.h.b16 %v479
    %v748 = vunpack.c.l.b16 %v480
    %v749 = vunpack.c.h.b16 %v480
    %v750 = vunpack.c.l.b16 %v481
    %v751 = vunpack.c.h.b16 %v481
    %v752 = vunpack.c.l.b16 %v482
    %v753 = vunpack.c.h.b16 %v482
    %v754 = vunpack.c.l.b16 %v483
    %v755 = vunpack.c.h.b16 %v483
    %v756 = vunpack.c.l.b16 %v484
    %v757 = vunpack.c.h.b16 %v484
    %v758 = vunpack.c.l.b16 %v485
    %v759 = vunpack.c.h.b16 %v485
    %v760 = vunpack.c.l.b16 %v486
    %v761 = vunpack.c.h.b16 %v486
    %v762 = vunpack.c.l.b16 %v487
    %v763 = vunpack.c.h.b16 %v487
    %v764 = vunpack.c.l.b16 %v488
    %v765 = vunpack.c.h.b16 %v488
    %v766 = vunpack.c.l.b16 %v489
    %v767 = vunpack.c.h.b16 %v489
    %v768 = vunpack.c.l.b16 %v490
    %v769 = vunpack.c.h.b16 %v490
    %v770 = vunpack.c.l.b16 %v491
    %v771 = vunpack.c.h.b16 %v491
    %v772 = vunpack.c.l.b16 %v492
    %v773 = vunpack.c.h.b16 %v492
    %v774 = vunpack.c.l.b16 %v493
    %v775 = vunpack.c.h.b16 %v493
    %v776 = vunpack.c.l.b16 %v494
    %v777 = vunpack.c.h.b16 %v494
    %v778 = vunpack.c.l.b16 %v495
    %v779 = vunpack.c.h.b16 %v495
    %v780 = vunpack.c.l.b16 %v496
    %v781 = vunpack.c.h.b16 %v496
    %v782 = vunpack.c.l.b16 %v497
    %v783 = vunpack.c.h.b16 %v497
    %v784 = vunpack.c.l.b16 %v498
    %v785 = vunpack.c.h.b16 %v498
    %v786 = vunpack.c.l.b16 %v499
    %v787 = vunpack.c.h.b16 %v499
    %v788 = vunpack.c.l.b16 %v500
    %v789 = vunpack.c.h.b16 %v500
    %v790 = vunpack.c.l.b16 %v501
    %v791 = vunpack.c.h.b16 %v501
    %v792 = vunpack.c.l.b16 %v502
    %v793 = vunpack.c.h.b16 %v502
    %v794 = vunpack.c.l.b16 %v503
    %v795 = vunpack.c.h.b16 %v503
    %v796 = vunpack.c.l.b16 %v504
    %v797 = vunpack.c.h.b16 %v504
    %v798 = vunpack.c.l.b16 %v505
    %v799 = vunpack.c.h.b16 %v505
    %v800 = vunpack.c.l.b16 %v506
    %v801 = vunpack.c.h.b16 %v506
    %v802 = vunpack.c.l.b16 %v507
    %v803 = vunpack.c.h.b16 %v507
    %v804 = vunpack.c.l.b16 %v508
    %v805 = vunpack.c.h.b16 %v508
    %v806 = vunpack.c.l.b16 %v509
    %v807 = vunpack.c.h.b16 %v509
    %v808 = vunpack.c.l.b16 %v510
    %v809 = vunpack.c.h.b16 %v510
    %v810 = vunpack.c.l.b16 %v511
    %v811 = vunpack.c.h.b16 %v511
    %v812 = vpack.c.b16 %v622, %v620
    %v813 = vpack.c.b16 %v623, %v621
    %v814 = vpack.c.b16 %v626, %v624
    %v815 = vpack.c.b16 %v627, %v625
    %v816 = vpack.c.b16 %v630, %v628
    %v817 = vpack.c.b16 %v631, %v629
    %v818 = vpack.c.b16 %v634, %v632
    %v819 = vpack.c.b16 %v635, %v633
    %v820 = vpack.c.b16 %v638, %v636
    %v821 = vpack.c.b16 %v639, %v637
    %v822 = vpack.c.b16 %v642, %v640
    %v823 = vpack.c.b16 %v643, %v641
    %v824 = vpack.c.b16 %v646, %v644
    %v825 = vpack.c.b16 %v647, %v645
    %v826 = vpack.c.b16 %v650, %v648
    %v827 = vpack.c.b16 %v651, %v649
    %v828 = vpack.c.b16 %v654, %v652
    %v829 = vpack.c.b16 %v655, %v653
    %v830 = vpack.c.b16 %v658, %v656
    %v831 = vpack.c.b16 %v659, %v657
    %v832 = vpack.c.b16 %v662, %v660
    %v833 = vpack.c.b16 %v663, %v661
    %v834 = vpack.c.b16 %v666, %v664
    %v835 = vpack.c.b16 %v667, %v665
    %v836 = vpack.c.b16 %v670, %v668
    %v837 = vpack.c.b16 %v671, %v669
    %v838 = vpack.c.b16 %v674, %v672
    %v839 = vpack.c.b16 %v675, %v673
    %v840 = vpack.c.b16 %v678, %v676
    %v841 = vpack.c.b16 %v679, %v677
    %v842 = vpack.c.b16 %v682, %v680
    %v843 = vpack.c.b16 %v683, %v681
    %v844 = vpack.c.b16 %v686, %v684
    %v845 = vpack.c.b16 %v687, %v685
    %v846 = vpack.c.b16 %v690, %v688
    %v847 = vpack.c.b16 %v691, %v689
    %v848 = vpack.c.b16 %v694, %v692
    %v849 = vpack.c.b16 %v695, %v693
    %v850 = vpack.c.b16 %v698, %v696
    %v851 = vpack.c.b16 %v699, %v697
    %v852 = vpack.c.b16 %v702, %v700
    %v853 = vpack.c.b16 %v703, %v701
    %v854 = vpack.c.b16 %v706, %v704
    %v855 = vpack.c.b16 %v707, %v705
    %v856 = vpack.c.b16 %v710, %v708
    %v857 = vpack.c.b16 %v711, %v709
    %v858 = vpack.c.b16 %v714, %v712
    %v859 = vpack.c.b16 %v715, %v713
    %v860 = vpack.c.b16 %v718, %v716
    %v861 = vpack.c.b16 %v719, %v717
    %v862 = vpack.c.b16 %v722, %v720
    %v863 = vpack.c.b16 %v723, %v721
    %v864 = vpack.c.b16 %v726, %v724
    %v865 = vpack.c.b16 %v727, %v725
    %v866 = vpack.c.b16 %v730, %v728
    %v867 = vpack.c.b16 %v731, %v729
    %v868 = vpack.c.b16 %v734, %v732
    %v869 = vpack.c.b16 %v735, %v733
    %v870 = vpack.c.b16 %v738, %v736
    %v871 = vpack.c.b16 %v739, %v737
    %v872 = vpack.c.b16 %v742, %v740
    %v873 = vpack.c.b16 %v743, %v741
    %v874 = vpack.c.b16 %v746, %v744
    %v875 = vpack.c.b16 %v747, %v745
    %v876 = vpack.c.b16 %v750, %v748
    %v877 = vpack.c.b16 %v751, %v749
    %v878 = vpack.c.b16 %v754, %v752
    %v879 = vpack.c.b16 %v755, %v753
    %v880 = vpack.c.b16 %v758, %v756
    %v881 = vpack.c.b16 %v759, %v757
    %v882 = vpack.c.b16 %v762, %v760
    %v883 = vpack.c.b16 %v763, %v761
    %v884 = vpack.c.b16 %v766, %v764
    %v885 = vpack.c.b16 %v767, %v765
    %v886 = vpack.c.b16 %v770, %v768
    %v887 = vpack.c.b16 %v771, %v769
    %v888 = vpack.c.b16 %v774, %v772
    %v889 = vpack.c.b16 %v775, %v773
    %v890 = vpack.c.b16 %v778, %v776
    %v891 = vpack.c.b16 %v779, %v777
    %v892 = vpack.c.b16 %v782, %v780
    %v893 = vpack.c.b16 %v783, %v781
    %v894 = vpack.c.b16 %v786, %v784
    %v895 = vpack.c.b16 %v787, %v785
    %v896 = vpack.c.b16 %v790, %v788
    %v897 = vpack.c.b16 %v791, %v789
    %v898 = vpack.c.b16 %v794, %v792
    %v899 = vpack.c.b16 %v795, %v793
    %v900 = vpack.c.b16 %v798, %v796
    %v901 = vpack.c.b16 %v799, %v797
    %v902 = vpack.c.b16 %v802, %v800
    %v903 = vpack.c.b16 %v803, %v801
    %v904 = vpack.c.b16 %v806, %v804
    %v905 = vpack.c.b16 %v807, %v805
    %v906 = vpack.c.b16 %v810, %v808
    %v907 = vpack.c.b16 %v811, %v809
    %1004 = vmatprep.subr.bf16.mxu0 %v813
    %1005 = vmatpush1.bf16.msra.mxu0 %v812
    %1006 = vmatprep.subr.bf16.mxu0 %v815
    %1007 = vmatpush1.bf16.msra.mxu0 %v814
    %1008 = vmatprep.subr.bf16.mxu0 %v817
    %1009 = vmatpush1.bf16.msra.mxu0 %v816
    %1010 = vmatprep.subr.bf16.mxu0 %v819
    %1011 = vmatpush1.bf16.msra.mxu0 %v818
    %1012 = vmatprep.subr.bf16.mxu0 %v821
    %1013 = vmatpush1.bf16.msra.mxu0 %v820
    %1014 = vmatprep.subr.bf16.mxu0 %v823
    %1015 = vmatpush1.bf16.msra.mxu0 %v822
    %1016 = vmatprep.subr.bf16.mxu0 %v825
    %1017 = vmatpush1.bf16.msra.mxu0 %v824
    %1018 = vmatprep.subr.bf16.mxu0 %v827
    %1019 = vmatpush1.bf16.msra.mxu0 %v826
    %1020 = vmatprep.subr.bf16.mxu0 %v829
    %1021 = vmatpush1.bf16.msra.mxu0 %v828
    %1022 = vmatprep.subr.bf16.mxu0 %v831
    %1023 = vmatpush1.bf16.msra.mxu0 %v830
    %1024 = vmatprep.subr.bf16.mxu0 %v833
    %1025 = vmatpush1.bf16.msra.mxu0 %v832
    %1026 = vmatprep.subr.bf16.mxu0 %v835
    %1027 = vmatpush1.bf16.msra.mxu0 %v834
    %1028 = vmatprep.subr.bf16.mxu0 %v837
    %1029 = vmatpush1.bf16.msra.mxu0 %v836
    %1030 = vmatprep.subr.bf16.mxu0 %v839
    %1031 = vmatpush1.bf16.msra.mxu0 %v838
    %1032 = vmatprep.subr.bf16.mxu0 %v841
    %1033 = vmatpush1.bf16.msra.mxu0 %v840
    %1034 = vmatprep.subr.bf16.mxu0 %v843
    %1035 = vmatpush1.bf16.msra.mxu0 %v842
    %1036 = vmatprep.mubr.bf16.mxu0 %v411
    %1037 = vmatmul.mubr.bf16.gmra.mrb[0].mxu0 %v410
    %v1038 = vpop.f32.mrb[0].mxu0
    %v1039 = vadd.f32 %v517, %v1038
    %v1040 = vpop.f32.mrb[0].mxu0
    %v1041 = vadd.f32 %v521, %v1040
    %v1042 = vpop.f32.mrb[0].mxu0
    %v1043 = vadd.f32 %v517, %v1042
    %v1044 = vpop.f32.mrb[0].mxu0
    %v1045 = vadd.f32 %v521, %v1044
    %1046 = vdwg.mxu0
    %1047 = vmatprep.subr.bf16.mxu0 %v845
    %1048 = vmatpush1.bf16.msra.mxu0 %v844
    %1049 = vmatprep.subr.bf16.mxu0 %v847
    %1050 = vmatpush1.bf16.msra.mxu0 %v846
    %1051 = vmatprep.subr.bf16.mxu0 %v849
    %1052 = vmatpush1.bf16.msra.mxu0 %v848
    %1053 = vmatprep.subr.bf16.mxu0 %v851
    %1054 = vmatpush1.bf16.msra.mxu0 %v850
    %1055 = vmatprep.subr.bf16.mxu0 %v853
    %1056 = vmatpush1.bf16.msra.mxu0 %v852
    %1057 = vmatprep.subr.bf16.mxu0 %v855
    %1058 = vmatpush1.bf16.msra.mxu0 %v854
    %1059 = vmatprep.subr.bf16.mxu0 %v857
    %1060 = vmatpush1.bf16.msra.mxu0 %v856
    %1061 = vmatprep.subr.bf16.mxu0 %v859
    %1062 = vmatpush1.bf16.msra.mxu0 %v858
    %1063 = vmatprep.subr.bf16.mxu0 %v861
    %1064 = vmatpush1.bf16.msra.mxu0 %v860
    %1065 = vmatprep.subr.bf16.mxu0 %v863
    %1066 = vmatpush1.bf16.msra.mxu0 %v862
    %1067 = vmatprep.subr.bf16.mxu0 %v865
    %1068 = vmatpush1.bf16.msra.mxu0 %v864
    %1069 = vmatprep.subr.bf16.mxu0 %v867
    %1070 = vmatpush1.bf16.msra.mxu0 %v866
    %1071 = vmatprep.subr.bf16.mxu0 %v869
    %1072 = vmatpush1.bf16.msra.mxu0 %v868
    %1073 = vmatprep.subr.bf16.mxu0 %v871
    %1074 = vmatpush1.bf16.msra.mxu0 %v870
    %1075 = vmatprep.subr.bf16.mxu0 %v873
    %1076 = vmatpush1.bf16.msra.mxu0 %v872
    %1077 = vmatprep.subr.bf16.mxu0 %v875
    %1078 = vmatpush1.bf16.msra.mxu0 %v874
    %1079 = vmatprep.mubr.bf16.mxu0 %v413
    %1080 = vmatmul.mubr.bf16.gmra.mrb[0].mxu0 %v412
    %v1081 = vpop.f32.mrb[0].mxu0
    %v1082 = vadd.f32 %v1039, %v1081
    %v1083 = vpop.f32.mrb[0].mxu0
    %v1084 = vadd.f32 %v1041, %v1083
    %v1085 = vpop.f32.mrb[0].mxu0
    %v1086 = vadd.f32 %v1043, %v1085
    %v1087 = vpop.f32.mrb[0].mxu0
    %v1088 = vadd.f32 %v1045, %v1087
    %1089 = vdwg.mxu0
    %1090 = vmatprep.subr.bf16.mxu0 %v877
    %1091 = vmatpush1.bf16.msra.mxu0 %v876
    %1092 = vmatprep.subr.bf16.mxu0 %v879
    %1093 = vmatpush1.bf16.msra.mxu0 %v878
    %1094 = vmatprep.subr.bf16.mxu0 %v881
    %1095 = vmatpush1.bf16.msra.mxu0 %v880
    %1096 = vmatprep.subr.bf16.mxu0 %v883
    %1097 = vmatpush1.bf16.msra.mxu0 %v882
    %1098 = vmatprep.subr.bf16.mxu0 %v885
    %1099 = vmatpush1.bf16.msra.mxu0 %v884
    %1100 = vmatprep.subr.bf16.mxu0 %v887
    %1101 = vmatpush1.bf16.msra.mxu0 %v886
    %1102 = vmatprep.subr.bf16.mxu0 %v889
    %1103 = vmatpush1.bf16.msra.mxu0 %v888
    %1104 = vmatprep.subr.bf16.mxu0 %v891
    %1105 = vmatpush1.bf16.msra.mxu0 %v890
    %1106 = vmatprep.subr.bf16.mxu0 %v893
    %1107 = vmatpush1.bf16.msra.mxu0 %v892
    %1108 = vmatprep.subr.bf16.mxu0 %v895
    %1109 = vmatpush1.bf16.msra.mxu0 %v894
    %1110 = vmatprep.subr.bf16.mxu0 %v897
    %1111 = vmatpush1.bf16.msra.mxu0 %v896
    %1112 = vmatprep.subr.bf16.mxu0 %v899
    %1113 = vmatpush1.bf16.msra.mxu0 %v898
    %1114 = vmatprep.subr.bf16.mxu0 %v901
    %1115 = vmatpush1.bf16.msra.mxu0 %v900
    %1116 = vmatprep.subr.bf16.mxu0 %v903
    %1117 = vmatpush1.bf16.msra.mxu0 %v902
    %1118 = vmatprep.subr.bf16.mxu0 %v905
    %1119 = vmatpush1.bf16.msra.mxu0 %v904
    %1120 = vmatprep.subr.bf16.mxu0 %v907
    %1121 = vmatpush1.bf16.msra.mxu0 %v906
    %1122 = vmatprep.mubr.bf16.mxu0 %v415
    %1123 = vmatmul.mubr.bf16.gmra.mrb[0].mxu0 %v414
    %v1124 = vpop.f32.mrb[0].mxu0
    %v1125 = vadd.f32 %v1082, %v1124
    %v1126 = vpop.f32.mrb[0].mxu0
    %v1127 = vadd.f32 %v1084, %v1126
    %v1128 = vpop.f32.mrb[0].mxu0
    %v1129 = vadd.f32 %v1086, %v1128
    %v1130 = vpop.f32.mrb[0].mxu0
    %v1131 = vadd.f32 %v1088, %v1130
    %1132 = vdwg.mxu0
    %v1133 = vmax.f32 %v1125, 0.0
    %v1134 = vmax.f32 %v1127, 0.0
    %v1135 = vmax.f32 %v1129, 0.0
    %v1136 = vmax.f32 %v1131, 0.0
    %v1137 = vrot.slane %v1133, 7
    %v1138 = vrot.slane %v1134, 7
    %v1139 = vrot.slane %v1135, 7
    %v1140 = vrot.slane %v1136, 7
    %v1141 = vsel %vm129, %v1137, %v1139
    %v1142 = vsel %vm129, %v1138, %v1140
    %v1143 = vsel %vm129, %v1139, %v1137
    %v1144 = vsel %vm129, %v1140, %v1138
    %v1145 = vsel %vm134, 0.0, %v1143
    %v1146 = vsel %vm134, 0.0, %v1144
    %v1147 = vsel %vm135, 0.0, %v1141
    %v1148 = vsel %vm135, 0.0, %v1142
    %v1149 = vrot.slane %v1133, 1
    %v1150 = vrot.slane %v1134, 1
    %v1151 = vrot.slane %v1135, 1
    %v1152 = vrot.slane %v1136, 1
    %v1153 = vsel %vm140, %v1149, %v1151
    %v1154 = vsel %vm140, %v1150, %v1152
    %v1155 = vsel %vm140, %v1151, %v1149
    %v1156 = vsel %vm140, %v1152, %v1150
    %v1157 = vsel %vm145, 0.0, %v1153
    %v1158 = vsel %vm145, 0.0, %v1154
    %v1159 = vsel %vm146, 0.0, %v1155
    %v1160 = vsel %vm146, 0.0, %v1156
    %v1161 = vpack.c.bf16 %v1147, %v1145
    %v1162 = vpack.c.bf16 %v1148, %v1146
    %v1163 = vpack.c.bf16 %v1135, %v1133
    %v1164 = vpack.c.bf16 %v1136, %v1134
    %v1165 = vpack.c.bf16 %v1159, %v1157
    %v1166 = vpack.c.bf16 %v1160, %v1158
    %v1167 = vld [vmem:[%s7] sm:$0xf]
    %v1168 = vld [vmem:[%s7 + $0x4] sm:$0xf]
    %v1169 = vld [vmem:[%s7 + $0x8] sm:$0xf]
    %v1170 = vld [vmem:[%s7 + $0xc] sm:$0xf]
    %v1171 = vld [vmem:[%s7 + $0x10] sm:$0xf]
    %v1172 = vld [vmem:[%s7 + $0x14] sm:$0xf]
    %v1173 = vld [vmem:[%s7 + $0x18] sm:$0xf]
    %v1174 = vld [vmem:[%s7 + $0x1c] sm:$0xf]
    %v1175 = vld [vmem:[%s7 + $0x20] sm:$0xf]
    %v1176 = vld [vmem:[%s7 + $0x24] sm:$0xf]
    %v1177 = vld [vmem:[%s7 + $0x28] sm:$0xf]
    %v1178 = vld [vmem:[%s7 + $0x2c] sm:$0xf]
    %v1179 = vld [vmem:[%s7 + $0x30] sm:$0xf]
    %v1180 = vld [vmem:[%s7 + $0x34] sm:$0xf]
    %v1181 = vld [vmem:[%s7 + $0x38] sm:$0xf]
    %v1182 = vld [vmem:[%s7 + $0x3c] sm:$0xf]
    %v1183 = vld [vmem:[%s7 + $0x40] sm:$0xf]
    %v1184 = vld [vmem:[%s7 + $0x44] sm:$0xf]
    %v1185 = vld [vmem:[%s7 + $0x48] sm:$0xf]
    %v1186 = vld [vmem:[%s7 + $0x4c] sm:$0xf]
    %v1187 = vld [vmem:[%s7 + $0x50] sm:$0xf]
    %v1188 = vld [vmem:[%s7 + $0x54] sm:$0xf]
    %v1189 = vld [vmem:[%s7 + $0x58] sm:$0xf]
    %v1190 = vld [vmem:[%s7 + $0x5c] sm:$0xf]
    %v1191 = vld [vmem:[%s7 + $0x60] sm:$0xf]
    %v1192 = vld [vmem:[%s7 + $0x64] sm:$0xf]
    %v1193 = vld [vmem:[%s7 + $0x68] sm:$0xf]
    %v1194 = vld [vmem:[%s7 + $0x6c] sm:$0xf]
    %v1195 = vld [vmem:[%s7 + $0x70] sm:$0xf]
    %v1196 = vld [vmem:[%s7 + $0x74] sm:$0xf]
    %v1197 = vld [vmem:[%s7 + $0x78] sm:$0xf]
    %v1198 = vld [vmem:[%s7 + $0x7c] sm:$0xf]
    %v1199 = vld [vmem:[%s7 + $0x80] sm:$0xf]
    %v1200 = vld [vmem:[%s7 + $0x84] sm:$0xf]
    %v1201 = vld [vmem:[%s7 + $0x88] sm:$0xf]
    %v1202 = vld [vmem:[%s7 + $0x8c] sm:$0xf]
    %v1203 = vld [vmem:[%s7 + $0x90] sm:$0xf]
    %v1204 = vld [vmem:[%s7 + $0x94] sm:$0xf]
    %v1205 = vld [vmem:[%s7 + $0x98] sm:$0xf]
    %v1206 = vld [vmem:[%s7 + $0x9c] sm:$0xf]
    %v1207 = vld [vmem:[%s7 + $0xa0] sm:$0xf]
    %v1208 = vld [vmem:[%s7 + $0xa4] sm:$0xf]
    %v1209 = vld [vmem:[%s7 + $0xa8] sm:$0xf]
    %v1210 = vld [vmem:[%s7 + $0xac] sm:$0xf]
    %v1211 = vld [vmem:[%s7 + $0xb0] sm:$0xf]
    %v1212 = vld [vmem:[%s7 + $0xb4] sm:$0xf]
    %v1213 = vld [vmem:[%s7 + $0xb8] sm:$0xf]
    %v1214 = vld [vmem:[%s7 + $0xbc] sm:$0xf]
    %v1215 = vld [vmem:[%s7 + $0xc0] sm:$0xf]
    %v1216 = vld [vmem:[%s7 + $0xc4] sm:$0xf]
    %v1217 = vld [vmem:[%s7 + $0xc8] sm:$0xf]
    %v1218 = vld [vmem:[%s7 + $0xcc] sm:$0xf]
    %v1219 = vld [vmem:[%s7 + $0xd0] sm:$0xf]
    %v1220 = vld [vmem:[%s7 + $0xd4] sm:$0xf]
    %v1221 = vld [vmem:[%s7 + $0xd8] sm:$0xf]
    %v1222 = vld [vmem:[%s7 + $0xdc] sm:$0xf]
    %v1223 = vld [vmem:[%s7 + $0xe0] sm:$0xf]
    %v1224 = vld [vmem:[%s7 + $0xe4] sm:$0xf]
    %v1225 = vld [vmem:[%s7 + $0xe8] sm:$0xf]
    %v1226 = vld [vmem:[%s7 + $0xec] sm:$0xf]
    %v1227 = vld [vmem:[%s7 + $0xf0] sm:$0xf]
    %v1228 = vld [vmem:[%s7 + $0xf4] sm:$0xf]
    %v1229 = vld [vmem:[%s7 + $0xf8] sm:$0xf]
    %v1230 = vld [vmem:[%s7 + $0xfc] sm:$0xf]
    %v1231 = vld [vmem:[%s7 + $0x100] sm:$0xf]
    %v1232 = vld [vmem:[%s7 + $0x104] sm:$0xf]
    %v1233 = vld [vmem:[%s7 + $0x108] sm:$0xf]
    %v1234 = vld [vmem:[%s7 + $0x10c] sm:$0xf]
    %v1235 = vld [vmem:[%s7 + $0x110] sm:$0xf]
    %v1236 = vld [vmem:[%s7 + $0x114] sm:$0xf]
    %v1237 = vld [vmem:[%s7 + $0x118] sm:$0xf]
    %v1238 = vld [vmem:[%s7 + $0x11c] sm:$0xf]
    %v1239 = vld [vmem:[%s7 + $0x120] sm:$0xf]
    %v1240 = vld [vmem:[%s7 + $0x124] sm:$0xf]
    %v1241 = vld [vmem:[%s7 + $0x128] sm:$0xf]
    %v1242 = vld [vmem:[%s7 + $0x12c] sm:$0xf]
    %v1243 = vld [vmem:[%s7 + $0x130] sm:$0xf]
    %v1244 = vld [vmem:[%s7 + $0x134] sm:$0xf]
    %v1245 = vld [vmem:[%s7 + $0x138] sm:$0xf]
    %v1246 = vld [vmem:[%s7 + $0x13c] sm:$0xf]
    %v1247 = vld [vmem:[%s7 + $0x140] sm:$0xf]
    %v1248 = vld [vmem:[%s7 + $0x144] sm:$0xf]
    %v1249 = vld [vmem:[%s7 + $0x148] sm:$0xf]
    %v1250 = vld [vmem:[%s7 + $0x14c] sm:$0xf]
    %v1251 = vld [vmem:[%s7 + $0x150] sm:$0xf]
    %v1252 = vld [vmem:[%s7 + $0x154] sm:$0xf]
    %v1253 = vld [vmem:[%s7 + $0x158] sm:$0xf]
    %v1254 = vld [vmem:[%s7 + $0x15c] sm:$0xf]
    %v1255 = vld [vmem:[%s7 + $0x160] sm:$0xf]
    %v1256 = vld [vmem:[%s7 + $0x164] sm:$0xf]
    %v1257 = vld [vmem:[%s7 + $0x168] sm:$0xf]
    %v1258 = vld [vmem:[%s7 + $0x16c] sm:$0xf]
    %v1259 = vld [vmem:[%s7 + $0x170] sm:$0xf]
    %v1260 = vld [vmem:[%s7 + $0x174] sm:$0xf]
    %v1261 = vld [vmem:[%s7 + $0x178] sm:$0xf]
    %v1262 = vld [vmem:[%s7 + $0x17c] sm:$0xf]
    %v1263 = vld [vmem:[%s8] sm:$0x1]
    %v1265 = vlaneseq
    %v1266 = vshrl.u32 %v1265, 7
    %v1267 = vsub.s32 0, %v1266
    %v1268 = vrot.slane %v1263, %v1267
    %v1366 = vunpack.c.l.b16 %v1167
    %v1367 = vunpack.c.l.b16 %v1168
    %v1368 = vunpack.c.l.b16 %v1169
    %v1369 = vunpack.c.l.b16 %v1170
    %v1370 = vunpack.c.l.b16 %v1171
    %v1371 = vunpack.c.l.b16 %v1172
    %v1372 = vunpack.c.l.b16 %v1173
    %v1373 = vunpack.c.l.b16 %v1174
    %v1374 = vunpack.c.l.b16 %v1175
    %v1375 = vunpack.c.l.b16 %v1176
    %v1376 = vunpack.c.l.b16 %v1177
    %v1377 = vunpack.c.l.b16 %v1178
    %v1378 = vunpack.c.l.b16 %v1179
    %v1379 = vunpack.c.l.b16 %v1180
    %v1380 = vunpack.c.l.b16 %v1181
    %v1381 = vunpack.c.l.b16 %v1182
    %v1382 = vunpack.c.l.b16 %v1183
    %v1383 = vunpack.c.l.b16 %v1184
    %v1384 = vunpack.c.l.b16 %v1185
    %v1385 = vunpack.c.l.b16 %v1186
    %v1386 = vunpack.c.l.b16 %v1187
    %v1387 = vunpack.c.l.b16 %v1188
    %v1388 = vunpack.c.l.b16 %v1189
    %v1389 = vunpack.c.l.b16 %v1190
    %v1390 = vunpack.c.l.b16 %v1191
    %v1391 = vunpack.c.l.b16 %v1192
    %v1392 = vunpack.c.l.b16 %v1193
    %v1393 = vunpack.c.l.b16 %v1194
    %v1394 = vunpack.c.l.b16 %v1195
    %v1395 = vunpack.c.l.b16 %v1196
    %v1396 = vunpack.c.l.b16 %v1197
    %v1397 = vunpack.c.l.b16 %v1198
    %v1398 = vunpack.c.l.b16 %v1199
    %v1399 = vunpack.c.l.b16 %v1200
    %v1400 = vunpack.c.l.b16 %v1201
    %v1401 = vunpack.c.l.b16 %v1202
    %v1402 = vunpack.c.l.b16 %v1203
    %v1403 = vunpack.c.l.b16 %v1204
    %v1404 = vunpack.c.l.b16 %v1205
    %v1405 = vunpack.c.l.b16 %v1206
    %v1406 = vunpack.c.l.b16 %v1207
    %v1407 = vunpack.c.l.b16 %v1208
    %v1408 = vunpack.c.l.b16 %v1209
    %v1409 = vunpack.c.l.b16 %v1210
    %v1410 = vunpack.c.l.b16 %v1211
    %v1411 = vunpack.c.l.b16 %v1212
    %v1412 = vunpack.c.l.b16 %v1213
    %v1413 = vunpack.c.l.b16 %v1214
    %v1414 = vunpack.c.l.b16 %v1215
    %v1415 = vunpack.c.l.b16 %v1216
    %v1416 = vunpack.c.l.b16 %v1217
    %v1417 = vunpack.c.l.b16 %v1218
    %v1418 = vunpack.c.l.b16 %v1219
    %v1419 = vunpack.c.l.b16 %v1220
    %v1420 = vunpack.c.l.b16 %v1221
    %v1421 = vunpack.c.l.b16 %v1222
    %v1422 = vunpack.c.l.b16 %v1223
    %v1423 = vunpack.c.l.b16 %v1224
    %v1424 = vunpack.c.l.b16 %v1225
    %v1425 = vunpack.c.l.b16 %v1226
    %v1426 = vunpack.c.l.b16 %v1227
    %v1427 = vunpack.c.l.b16 %v1228
    %v1428 = vunpack.c.l.b16 %v1229
    %v1429 = vunpack.c.l.b16 %v1230
    %v1430 = vunpack.c.l.b16 %v1231
    %v1431 = vunpack.c.l.b16 %v1232
    %v1432 = vunpack.c.l.b16 %v1233
    %v1433 = vunpack.c.l.b16 %v1234
    %v1434 = vunpack.c.l.b16 %v1235
    %v1435 = vunpack.c.l.b16 %v1236
    %v1436 = vunpack.c.l.b16 %v1237
    %v1437 = vunpack.c.l.b16 %v1238
    %v1438 = vunpack.c.l.b16 %v1239
    %v1439 = vunpack.c.l.b16 %v1240
    %v1440 = vunpack.c.l.b16 %v1241
    %v1441 = vunpack.c.l.b16 %v1242
    %v1442 = vunpack.c.l.b16 %v1243
    %v1443 = vunpack.c.l.b16 %v1244
    %v1444 = vunpack.c.l.b16 %v1245
    %v1445 = vunpack.c.l.b16 %v1246
    %v1446 = vunpack.c.l.b16 %v1247
    %v1447 = vunpack.c.l.b16 %v1248
    %v1448 = vunpack.c.l.b16 %v1249
    %v1449 = vunpack.c.l.b16 %v1250
    %v1450 = vunpack.c.l.b16 %v1251
    %v1451 = vunpack.c.l.b16 %v1252
    %v1452 = vunpack.c.l.b16 %v1253
    %v1453 = vunpack.c.l.b16 %v1254
    %v1454 = vunpack.c.l.b16 %v1255
    %v1455 = vunpack.c.l.b16 %v1256
    %v1456 = vunpack.c.l.b16 %v1257
    %v1457 = vunpack.c.l.b16 %v1258
    %v1458 = vunpack.c.l.b16 %v1259
    %v1459 = vunpack.c.l.b16 %v1260
    %v1460 = vunpack.c.l.b16 %v1261
    %v1461 = vunpack.c.l.b16 %v1262
    %v1462 = vpack.c.b16 %v1367, %v1366
    %v1463 = vpack.c.b16 %v1369, %v1368
    %v1464 = vpack.c.b16 %v1371, %v1370
    %v1465 = vpack.c.b16 %v1373, %v1372
    %v1466 = vpack.c.b16 %v1375, %v1374
    %v1467 = vpack.c.b16 %v1377, %v1376
    %v1468 = vpack.c.b16 %v1379, %v1378
    %v1469 = vpack.c.b16 %v1381, %v1380
    %v1470 = vpack.c.b16 %v1383, %v1382
    %v1471 = vpack.c.b16 %v1385, %v1384
    %v1472 = vpack.c.b16 %v1387, %v1386
    %v1473 = vpack.c.b16 %v1389, %v1388
    %v1474 = vpack.c.b16 %v1391, %v1390
    %v1475 = vpack.c.b16 %v1393, %v1392
    %v1476 = vpack.c.b16 %v1395, %v1394
    %v1477 = vpack.c.b16 %v1397, %v1396
    %v1478 = vpack.c.b16 %v1399, %v1398
    %v1479 = vpack.c.b16 %v1401, %v1400
    %v1480 = vpack.c.b16 %v1403, %v1402
    %v1481 = vpack.c.b16 %v1405, %v1404
    %v1482 = vpack.c.b16 %v1407, %v1406
    %v1483 = vpack.c.b16 %v1409, %v1408
    %v1484 = vpack.c.b16 %v1411, %v1410
    %v1485 = vpack.c.b16 %v1413, %v1412
    %v1486 = vpack.c.b16 %v1415, %v1414
    %v1487 = vpack.c.b16 %v1417, %v1416
    %v1488 = vpack.c.b16 %v1419, %v1418
    %v1489 = vpack.c.b16 %v1421, %v1420
    %v1490 = vpack.c.b16 %v1423, %v1422
    %v1491 = vpack.c.b16 %v1425, %v1424
    %v1492 = vpack.c.b16 %v1427, %v1426
    %v1493 = vpack.c.b16 %v1429, %v1428
    %v1494 = vpack.c.b16 %v1431, %v1430
    %v1495 = vpack.c.b16 %v1433, %v1432
    %v1496 = vpack.c.b16 %v1435, %v1434
    %v1497 = vpack.c.b16 %v1437, %v1436
    %v1498 = vpack.c.b16 %v1439, %v1438
    %v1499 = vpack.c.b16 %v1441, %v1440
    %v1500 = vpack.c.b16 %v1443, %v1442
    %v1501 = vpack.c.b16 %v1445, %v1444
    %v1502 = vpack.c.b16 %v1447, %v1446
    %v1503 = vpack.c.b16 %v1449, %v1448
    %v1504 = vpack.c.b16 %v1451, %v1450
    %v1505 = vpack.c.b16 %v1453, %v1452
    %v1506 = vpack.c.b16 %v1455, %v1454
    %v1507 = vpack.c.b16 %v1457, %v1456
    %v1508 = vpack.c.b16 %v1459, %v1458
    %v1509 = vpack.c.b16 %v1461, %v1460
    %1558 = vmatprep.subr.bf16.mxu0 0
    %1559 = vmatpush1.bf16.msra.mxu0 %v1462
    %1560 = vmatprep.subr.bf16.mxu0 0
    %1561 = vmatpush1.bf16.msra.mxu0 %v1463
    %1562 = vmatprep.subr.bf16.mxu0 0
    %1563 = vmatpush1.bf16.msra.mxu0 %v1464
    %1564 = vmatprep.subr.bf16.mxu0 0
    %1565 = vmatpush1.bf16.msra.mxu0 %v1465
    %1566 = vmatprep.subr.bf16.mxu0 0
    %1567 = vmatpush1.bf16.msra.mxu0 %v1466
    %1568 = vmatprep.subr.bf16.mxu0 0
    %1569 = vmatpush1.bf16.msra.mxu0 %v1467
    %1570 = vmatprep.subr.bf16.mxu0 0
    %1571 = vmatpush1.bf16.msra.mxu0 %v1468
    %1572 = vmatprep.subr.bf16.mxu0 0
    %1573 = vmatpush1.bf16.msra.mxu0 %v1469
    %1574 = vmatprep.subr.bf16.mxu0 0
    %1575 = vmatpush1.bf16.msra.mxu0 %v1470
    %1576 = vmatprep.subr.bf16.mxu0 0
    %1577 = vmatpush1.bf16.msra.mxu0 %v1471
    %1578 = vmatprep.subr.bf16.mxu0 0
    %1579 = vmatpush1.bf16.msra.mxu0 %v1472
    %1580 = vmatprep.subr.bf16.mxu0 0
    %1581 = vmatpush1.bf16.msra.mxu0 %v1473
    %1582 = vmatprep.subr.bf16.mxu0 0
    %1583 = vmatpush1.bf16.msra.mxu0 %v1474
    %1584 = vmatprep.subr.bf16.mxu0 0
    %1585 = vmatpush1.bf16.msra.mxu0 %v1475
    %1586 = vmatprep.subr.bf16.mxu0 0
    %1587 = vmatpush1.bf16.msra.mxu0 %v1476
    %1588 = vmatprep.subr.bf16.mxu0 0
    %1589 = vmatpush1.bf16.msra.mxu0 %v1477
    %1590 = vmatprep.mubr.bf16.mxu0 %v1162
    %1591 = vmatmul.mubr.bf16.gmra.mrb[0].mxu0 %v1161
    %v1592 = vpop.f32.mrb[0].mxu0
    %v1593 = vadd.f32 %v1268, %v1592
    %v1594 = vpop.f32.mrb[0].mxu0
    %v1595 = vpop.f32.mrb[0].mxu0
    %v1596 = vadd.f32 %v1268, %v1595
    %v1597 = vpop.f32.mrb[0].mxu0
    %1598 = vdwg.mxu0
    %1599 = vmatprep.subr.bf16.mxu0 0
    %1600 = vmatpush1.bf16.msra.mxu0 %v1478
    %1601 = vmatprep.subr.bf16.mxu0 0
    %1602 = vmatpush1.bf16.msra.mxu0 %v1479
    %1603 = vmatprep.subr.bf16.mxu0 0
    %1604 = vmatpush1.bf16.msra.mxu0 %v1480
    %1605 = vmatprep.subr.bf16.mxu0 0
    %1606 = vmatpush1.bf16.msra.mxu0 %v1481
    %1607 = vmatprep.subr.bf16.mxu0 0
    %1608 = vmatpush1.bf16.msra.mxu0 %v1482
    %1609 = vmatprep.subr.bf16.mxu0 0
    %1610 = vmatpush1.bf16.msra.mxu0 %v1483
    %1611 = vmatprep.subr.bf16.mxu0 0
    %1612 = vmatpush1.bf16.msra.mxu0 %v1484
    %1613 = vmatprep.subr.bf16.mxu0 0
    %1614 = vmatpush1.bf16.msra.mxu0 %v1485
    %1615 = vmatprep.subr.bf16.mxu0 0
    %1616 = vmatpush1.bf16.msra.mxu0 %v1486
    %1617 = vmatprep.subr.bf16.mxu0 0
    %1618 = vmatpush1.bf16.msra.mxu0 %v1487
    %1619 = vmatprep.subr.bf16.mxu0 0
    %1620 = vmatpush1.bf16.msra.mxu0 %v1488
    %1621 = vmatprep.subr.bf16.mxu0 0
    %1622 = vmatpush1.bf16.msra.mxu0 %v1489
    %1623 = vmatprep.subr.bf16.mxu0 0
    %1624 = vmatpush1.bf16.msra.mxu0 %v1490
    %1625 = vmatprep.subr.bf16.mxu0 0
    %1626 = vmatpush1.bf16.msra.mxu0 %v1491
    %1627 = vmatprep.subr.bf16.mxu0 0
    %1628 = vmatpush1.bf16.msra.mxu0 %v1492
    %1629 = vmatprep.subr.bf16.mxu0 0
    %1630 = vmatpush1.bf16.msra.mxu0 %v1493
    %1631 = vmatprep.mubr.bf16.mxu0 %v1164
    %1632 = vmatmul.mubr.bf16.gmra.mrb[0].mxu0 %v1163
    %v1633 = vpop.f32.mrb[0].mxu0
    %v1634 = vadd.f32 %v1593, %v1633
    %v1635 = vpop.f32.mrb[0].mxu0
    %v1636 = vpop.f32.mrb[0].mxu0
    %v1637 = vadd.f32 %v1596, %v1636
    %v1638 = vpop.f32.mrb[0].mxu0
    %1639 = vdwg.mxu0
    %1640 = vmatprep.subr.bf16.mxu0 0
    %1641 = vmatpush1.bf16.msra.mxu0 %v1494
    %1642 = vmatprep.subr.bf16.mxu0 0
    %1643 = vmatpush1.bf16.msra.mxu0 %v1495
    %1644 = vmatprep.subr.bf16.mxu0 0
    %1645 = vmatpush1.bf16.msra.mxu0 %v1496
    %1646 = vmatprep.subr.bf16.mxu0 0
    %1647 = vmatpush1.bf16.msra.mxu0 %v1497
    %1648 = vmatprep.subr.bf16.mxu0 0
    %1649 = vmatpush1.bf16.msra.mxu0 %v1498
    %1650 = vmatprep.subr.bf16.mxu0 0
    %1651 = vmatpush1.bf16.msra.mxu0 %v1499
    %1652 = vmatprep.subr.bf16.mxu0 0
    %1653 = vmatpush1.bf16.msra.mxu0 %v1500
    %1654 = vmatprep.subr.bf16.mxu0 0
    %1655 = vmatpush1.bf16.msra.mxu0 %v1501
    %1656 = vmatprep.subr.bf16.mxu0 0
    %1657 = vmatpush1.bf16.msra.mxu0 %v1502
    %1658 = vmatprep.subr.bf16.mxu0 0
    %1659 = vmatpush1.bf16.msra.mxu0 %v1503
    %1660 = vmatprep.subr.bf16.mxu0 0
    %1661 = vmatpush1.bf16.msra.mxu0 %v1504
    %1662 = vmatprep.subr.bf16.mxu0 0
    %1663 = vmatpush1.bf16.msra.mxu0 %v1505
    %1664 = vmatprep.subr.bf16.mxu0 0
    %1665 = vmatpush1.bf16.msra.mxu0 %v1506
    %1666 = vmatprep.subr.bf16.mxu0 0
    %1667 = vmatpush1.bf16.msra.mxu0 %v1507
    %1668 = vmatprep.subr.bf16.mxu0 0
    %1669 = vmatpush1.bf16.msra.mxu0 %v1508
    %1670 = vmatprep.subr.bf16.mxu0 0
    %1671 = vmatpush1.bf16.msra.mxu0 %v1509
    %1672 = vmatprep.mubr.bf16.mxu0 %v1166
    %1673 = vmatmul.mubr.bf16.gmra.mrb[0].mxu0 %v1165
    %v1674 = vpop.f32.mrb[0].mxu0
    %v1675 = vadd.f32 %v1634, %v1674
    %v1676 = vpop.f32.mrb[0].mxu0
    %v1677 = vpop.f32.mrb[0].mxu0
    %v1678 = vadd.f32 %v1637, %v1677
    %v1679 = vpop.f32.mrb[0].mxu0
    %1680 = vdwg.mxu0
    %1681 = vst.msk [vmem:[#allocation5] sm:$0xff] %vm50, %v1675
    %1682 = vst.msk [vmem:[#allocation5 + $0x8] sm:$0xff] %vm50, %v1678
    // Predicated region
    $region42: #{tpu_custom_call.1} parent=1 // pred_check
      _
    $region43: #{tpu_custom_call.1} parent=1 // pred_check_branch
      %1684 = sbr.rel (0) target = $region45
    $region44: #{tpu_custom_call.1} parent=1 // pred_region
      %s1686 = ssub.s32 256, 256
      %1687 = vsyncadd [#allocation4], %s1686
      %s1688 = sshll.u32 [#allocation5], 4
      %s1689 = int_to_ptr.vmem [resolvable:$true] %s1688
      %1694 = dma.vmem_to_hbm [thread:$0]  %s1689, 256, %s9, [#allocation4], 128, 128, 8
    $region45: #{tpu_custom_call.1} parent=1 // pred_fallthru
      _
    // Predicated region
    $region46: #{tpu_custom_call.1} parent=1 // pred_check
      _
    $region47: #{tpu_custom_call.1} parent=1 // pred_check_branch
      %1696 = sbr.rel (0) target = $region49
    $region48: #{tpu_custom_call.1} parent=1 // pred_region
      %1697 = dma.done [#allocation4], 256
    $region49: #{tpu_custom_call.1} parent=1 // pred_fallthru
      _
    %1698 = vsyncpa [#allocation3], 1
    %1699 = vsyncpa [#allocation4], 1

</llo_original>
